<compile_context>
chip_gen: v6e
topology: v6e:2x2x1
jax: 0.10.0
libtpu: 0.0.40
codegen_flags: <defaults>
</compile_context>

<pallas_src>
import functools

import jax
import jax.numpy as jnp
from jax.experimental import pallas as pl
from jax.experimental.pallas import tpu as pltpu


# ----------------------------- Pallas kernel ------------------------------- #

def _make_ensemble_kernel(depth, batch, n_nodes, feat, nhid):
    bn = batch * n_nodes
    del feat  # static; shapes come from the refs

    def kernel(x_ref, adj_ref, mask_ref, pool_ref, wf_ref, wh_ref, b_ref,
               preds_ref, embeds_ref):
        x = x_ref[...]                                   # [BN, F]
        adj = adj_ref[...]                               # [BN, BN] block-diag A_hat
        pool = pool_ref[...]                             # [B, BN] per-graph sum matrix
        mask = jnp.broadcast_to(mask_ref[...], (bn, nhid))   # hoisted broadcast

        bslab = b_ref[0]                                 # [n_bias, nhid]

        def wfeat(i):                                    # [F, nhid]
            return wf_ref[0, i]

        def whid(i):                                     # [nhid, nhid]
            return wh_ref[0, i]

        def bias(i):                                     # [1, nhid]
            return bslab[i][None, :]

        # Readout logits accumulated incrementally instead of concatenating features.
        sig_acc = jnp.dot(x, wfeat(1), preferred_element_type=jnp.float32)
        tanh_acc = jnp.dot(x, wfeat(2), preferred_element_type=jnp.float32)

        out = x
        for l in range(depth):
            if l == 0:
                h = jnp.dot(out, wfeat(0), preferred_element_type=jnp.float32)
            else:
                h = jnp.dot(out, whid(l - 1), preferred_element_type=jnp.float32)
            h = h + bias(l)                                           # Linear bias
            h = jnp.dot(h, whid(depth - 1 + l),                       # DenseGCNConv lin
                        preferred_element_type=jnp.float32)
            h = jnp.dot(adj, h, preferred_element_type=jnp.float32)   # A_hat @ h
            h = h + bias(depth + l)                                   # conv bias
            h = jnp.tanh(h)
            h = h * mask                                              # mask_x
            sig_acc = sig_acc + jnp.dot(h, whid(2 * depth - 1 + l),
                                        preferred_element_type=jnp.float32)
            tanh_acc = tanh_acc + jnp.dot(h, whid(3 * depth - 1 + l),
                                          preferred_element_type=jnp.float32)
            out = h

        sig = jax.nn.sigmoid(sig_acc + bias(2 * depth))
        tnh = jnp.tanh(tanh_acc + bias(2 * depth + 1))
        pooled = jnp.dot(pool, sig * tnh, preferred_element_type=jnp.float32)  # [B, nhid]
        embeds = jnp.tanh(pooled)

        # Final MLP head (f2 weights/bias zero-padded to nhid columns inside the slabs;
        # only the first 2 output lanes are meaningful).
        # TODO(synk): torch.nn.Dropout(p) only acts in training mode; treated as identity (eval).
        h1 = jnp.dot(embeds, whid(4 * depth - 1), preferred_element_type=jnp.float32)
        h1 = jnp.maximum(h1 + bias(2 * depth + 2), 0.0)
        full = jnp.dot(h1, whid(4 * depth), preferred_element_type=jnp.float32)
        full = full + bias(2 * depth + 3)                             # [B, nhid]
        preds = full[:, :2]
        cidx = jax.lax.broadcasted_iota(jnp.int32, preds.shape, 1)
        preds = jnp.where(cidx == 0, jax.nn.sigmoid(preds), preds)

        preds_ref[0, :, :] = preds.astype(preds_ref.dtype)
        embeds_ref[0, :, :] = embeds.astype(embeds_ref.dtype)

    return kernel


# --------------------------- wrapper / packing ------------------------------ #

def _normalize_adj(adj):
    """DenseGCNConv normalization with self-loops (add_loop=True)."""
    _, N, _ = adj.shape
    eye = jnp.eye(N, dtype=adj.dtype)[None]
    adj_sl = jnp.where(eye > 0, 1.0, adj)
    deg = jnp.maximum(jnp.sum(adj_sl, axis=-1), 1.0)
    dinv = jax.lax.rsqrt(deg)
    return dinv[:, :, None] * adj_sl * dinv[:, None, :]


def pack_ensemble_params(params_list, depth, feat, nhid):
    """Stack each member's 19 small arrays into 3 ensemble-major slabs."""
    def pack_one(p):
        sig_W, tanh_W = p['sig_W'], p['tanh_W']          # [F + depth*nhid, nhid]
        w_feat = jnp.stack([p['lin_W'][0], sig_W[:feat], tanh_W[:feat]], 0)
        mats = [p['lin_W'][l] for l in range(1, depth)]
        mats += list(p['conv_W'])
        mats += [sig_W[feat + l * nhid: feat + (l + 1) * nhid] for l in range(depth)]
        mats += [tanh_W[feat + l * nhid: feat + (l + 1) * nhid] for l in range(depth)]
        mats += [p['f1_W']]
        mats += [jnp.zeros((nhid, nhid), jnp.float32).at[:, :2].set(p['f2_W'])]
        w_hid = jnp.stack(mats, 0)                       # [4*depth+1, nhid, nhid]
        bs = [p['lin_b'][l].reshape(nhid) for l in range(depth)]
        bs += [p['conv_b'][l].reshape(nhid) for l in range(depth)]
        bs += [p['sig_b'].reshape(nhid), p['tanh_b'].reshape(nhid),
               p['f1_b'].reshape(nhid)]
        bs += [jnp.zeros((nhid,), jnp.float32).at[:2].set(p['f2_b'].reshape(2))]
        b_slab = jnp.stack(bs, 0)                        # [2*depth+4, nhid]
        return w_feat, w_hid, b_slab

    packed = [pack_one(p) for p in params_list]
    return (jnp.stack([t[0] for t in packed]),
            jnp.stack([t[1] for t in packed]),
            jnp.stack([t[2] for t in packed]))


@functools.partial(jax.jit, static_argnames=("depth",))
def _ensemble_forward_fused(x, adj, flags, w_feat, w_hid, b_slab, *, depth):
    B, N, F = x.shape
    E = w_feat.shape[0]
    nhid = w_feat.shape[-1]
    BN = B * N
    nmat = w_hid.shape[1]
    nbias = b_slab.shape[1]

    # Member-independent preprocessing, hoisted out of the kernel.
    adj_norm = _normalize_adj(adj.astype(jnp.float32))            # [B, N, N]
    # Block-diagonal layout => one flat [BN,BN]@[BN,H] MXU matmul instead of B batched ones.
    # TODO(synk): at large B*N the block-diag adjacency scales O((B*N)^2); tile adj over N then.
    adj_bd = (jnp.eye(B, dtype=jnp.float32)[:, None, :, None]
              * adj_norm[:, :, None, :]).reshape(BN, BN)
    x2d = x.astype(jnp.float32).reshape(BN, F)
    mask2d = flags.astype(jnp.float32).reshape(BN, 1)
    pool = jnp.repeat(jnp.eye(B, dtype=jnp.float32), N, axis=1)   # [B, BN]

    kernel = _make_ensemble_kernel(depth, B, N, F, nhid)
    preds_all, embeds_all = pl.pallas_call(
        kernel,
        out_shape=(jax.ShapeDtypeStruct((E, B, 2), jnp.float32),
                   jax.ShapeDtypeStruct((E, B, nhid), jnp.float32)),
        grid=(E,),
        in_specs=[
            pl.BlockSpec((BN, F), lambda e: (0, 0)),               # x (resident)
            pl.BlockSpec((BN, BN), lambda e: (0, 0)),              # adj_bd (resident)
            pl.BlockSpec((BN, 1), lambda e: (0, 0)),               # mask (resident)
            pl.BlockSpec((B, BN), lambda e: (0, 0)),               # pool (resident)
            pl.BlockSpec((1, 3, F, nhid), lambda e: (e, 0, 0, 0)),        # per-member
            pl.BlockSpec((1, nmat, nhid, nhid), lambda e: (e, 0, 0, 0)),  # per-member
            pl.BlockSpec((1, nbias, nhid), lambda e: (e, 0, 0)),          # per-member
        ],
        out_specs=(pl.BlockSpec((1, B, 2), lambda e: (e, 0, 0)),
                   pl.BlockSpec((1, B, nhid), lambda e: (e, 0, 0))),
        compiler_params=pltpu.CompilerParams(
            dimension_semantics=("parallel",)),
    )(x2d, adj_bd, mask2d, pool, w_feat, w_hid, b_slab)
    return preds_all, embeds_all


def ensemble_forward(x, adj, flags, params_list, depth):
    feat = x.shape[-1]
    nhid = params_list[0]['lin_W'][0].shape[1]
    w_feat, w_hid, b_slab = pack_ensemble_params(params_list, depth, feat, nhid)
    preds_all, embeds_all = _ensemble_forward_fused(
        x, adj, flags, w_feat, w_hid, b_slab, depth=depth)
    E = len(params_list)
    return ([preds_all[e] for e in range(E)], [embeds_all[e] for e in range(E)])


# --------------------------- parameter creation ----------------------------- #

def init_regressor_params(key, max_feat_num, depth, nhid):
    dim = max_feat_num + depth * nhid
    n_keys = 4 * depth + 8
    ks = jax.random.split(key, n_keys)
    ki = iter(range(n_keys))

    def w(shape):
        return 0.1 * jax.random.normal(ks[next(ki)], shape, jnp.float32)

    lin_W, lin_b, conv_W, conv_b = [], [], [], []
    for l in range(depth):
        fin = max_feat_num if l == 0 else nhid
        lin_W.append(w((fin, nhid)))
        lin_b.append(w((1, nhid)))
    for _ in range(depth):
        conv_W.append(w((nhid, nhid)))
        conv_b.append(w((1, nhid)))
    return dict(
        lin_W=lin_W, lin_b=lin_b, conv_W=conv_W, conv_b=conv_b,
        sig_W=w((dim, nhid)), sig_b=w((1, nhid)),
        tanh_W=w((dim, nhid)), tanh_b=w((1, nhid)),
        f1_W=w((nhid, nhid)), f1_b=w((1, nhid)),
        f2_W=w((nhid, 2)), f2_b=w((1, 2)),
    )


# ---------------------------- pure-JAX reference ---------------------------- #

def regressor_ref(x, adj, flags, p, depth):
    _, N, _ = x.shape
    eye = jnp.eye(N, dtype=jnp.float32)[None]
    adj_sl = jnp.where(eye > 0, 1.0, adj)
    deg = jnp.maximum(adj_sl.sum(-1), 1.0)
    dinv = 1.0 / jnp.sqrt(deg)
    adj_norm = dinv[:, :, None] * adj_sl * dinv[:, None, :]
    mask = flags[:, :, None]

    out = x
    parts = [x]
    for l in range(depth):
        h = jnp.einsum('bnf,fh->bnh', out, p['lin_W'][l]) + p['lin_b'][l][None]
        h = jnp.einsum('bnh,hk->bnk', h, p['conv_W'][l])
        h = jnp.einsum('bmn,bnk->bmk', adj_norm, h) + p['conv_b'][l][None]
        h = jnp.tanh(h) * mask
        parts.append(h)
        out = h
    cat = jnp.concatenate(parts, axis=-1)
    sig = jax.nn.sigmoid(jnp.einsum('bnd,dh->bnh', cat, p['sig_W']) + p['sig_b'][None])
    tnh = jnp.tanh(jnp.einsum('bnd,dh->bnh', cat, p['tanh_W']) + p['tanh_b'][None])
    embeds = jnp.tanh(jnp.sum(sig * tnh, axis=1))
    h1 = jnp.maximum(embeds @ p['f1_W'] + p['f1_b'], 0.0)
    preds = h1 @ p['f2_W'] + p['f2_b']
    preds = preds.at[:, 0].set(jax.nn.sigmoid(preds[:, 0]))
    return preds, embeds


# ---------------------------------- main ------------------------------------ #

if __name__ == "__main__":
    B, N, F = 2, 9, 4            # batch, max_node_num, max_feat_num
    depth, nhid = 2, 16
    dropout = 0.1                # identity in eval mode
    ensemble_size = 2

    key = jax.random.PRNGKey(0)
    kx, kadj, kflags, kparams = jax.random.split(key, 4)

    x = jax.random.normal(kx, (B, N, F), jnp.float32)
    a = (jax.random.uniform(kadj, (B, N, N)) > 0.5).astype(jnp.float32)
    adj = a * a.transpose(0, 2, 1)
    adj = adj * (1.0 - jnp.eye(N, dtype=jnp.float32)[None])      # no self-loops in input
    flags = (jax.random.uniform(kflags, (B, N)) > 0.2).astype(jnp.float32)

    member_keys = jax.random.split(kparams, ensemble_size)
    params_list = [init_regressor_params(k, F, depth, nhid) for k in member_keys]

    preds_list, embeds_list = ensemble_forward(x, adj, flags, params_list, depth)
    jax.block_until_ready((preds_list, embeds_list))

    # correctness check against pure-JAX reference
    for p, preds, embeds in zip(params_list, preds_list, embeds_list):
        rp, re = regressor_ref(x, adj, flags, p, depth)
        assert jnp.allclose(preds, rp, rtol=1e-4, atol=1e-4), "preds mismatch"
        assert jnp.allclose(embeds, re, rtol=1e-4, atol=1e-4), "embeds mismatch"

    print("KERNEL_OK")
</pallas_src>

<mosaic_0001>
module attributes {stable_mosaic.version = 11 : i64} {
  func.func @kernel(%arg0: i32, %arg1: memref<18x4xf32, #tpu.memory_space<vmem>>, %arg2: memref<18x18xf32, #tpu.memory_space<vmem>>, %arg3: memref<18x1xf32, #tpu.memory_space<vmem>>, %arg4: memref<2x18xf32, #tpu.memory_space<vmem>>, %arg5: memref<1x3x4x16xf32, #tpu.memory_space<vmem>>, %arg6: memref<1x9x16x16xf32, #tpu.memory_space<vmem>>, %arg7: memref<1x8x16xf32, #tpu.memory_space<vmem>>, %arg8: memref<1x2x2xf32, #tpu.memory_space<vmem>>, %arg9: memref<1x2x16xf32, #tpu.memory_space<vmem>>) attributes {dimension_semantics = [#tpu.dimension_semantics<parallel>], iteration_bounds = array<i64: 2>, scalar_prefetch = 0 : i64, scratch_operands = 0 : i64, tpu.core_type = #tpu.core_type<tc>, window_params = [{pipeline_mode = #tpu.pipeline_mode<synchronous>, transform_indices = @transform_0, window_bounds = array<i64: 18, 4>}, {pipeline_mode = #tpu.pipeline_mode<synchronous>, transform_indices = @transform_1, window_bounds = array<i64: 18, 18>}, {pipeline_mode = #tpu.pipeline_mode<synchronous>, transform_indices = @transform_2, window_bounds = array<i64: 18, 1>}, {pipeline_mode = #tpu.pipeline_mode<synchronous>, transform_indices = @transform_3, window_bounds = array<i64: 2, 18>}, {transform_indices = @transform_4, window_bounds = array<i64: 1, 3, 4, 16>}, {transform_indices = @transform_5, window_bounds = array<i64: 1, 9, 16, 16>}, {transform_indices = @transform_6, window_bounds = array<i64: 1, 8, 16>}, {transform_indices = @transform_7, window_bounds = array<i64: 1, 2, 2>}, {transform_indices = @transform_8, window_bounds = array<i64: 1, 2, 16>}]} {
    %c0 = arith.constant 0 : index
    %c0_0 = arith.constant 0 : index
    %0 = vector.load %arg1[%c0, %c0_0] : memref<18x4xf32, #tpu.memory_space<vmem>>, vector<18x4xf32>
    %c0_1 = arith.constant 0 : index
    %c0_2 = arith.constant 0 : index
    %1 = vector.load %arg2[%c0_1, %c0_2] : memref<18x18xf32, #tpu.memory_space<vmem>>, vector<18x18xf32>
    %c0_3 = arith.constant 0 : index
    %c0_4 = arith.constant 0 : index
    %2 = vector.load %arg4[%c0_3, %c0_4] : memref<2x18xf32, #tpu.memory_space<vmem>>, vector<2x18xf32>
    %c0_5 = arith.constant 0 : index
    %c0_6 = arith.constant 0 : index
    %3 = vector.load %arg3[%c0_5, %c0_6] : memref<18x1xf32, #tpu.memory_space<vmem>>, vector<18x1xf32>
    %4 = vector.shape_cast %3 : vector<18x1xf32> to vector<18x1xf32>
    %5 = vector.broadcast %4 : vector<18x1xf32> to vector<18x16xf32>
    %c0_7 = arith.constant 0 : index
    %c0_8 = arith.constant 0 : index
    %c0_9 = arith.constant 0 : index
    %6 = vector.load %arg7[%c0_7, %c0_8, %c0_9] : memref<1x8x16xf32, #tpu.memory_space<vmem>>, vector<1x8x16xf32>
    %7 = vector.shape_cast %6 : vector<1x8x16xf32> to vector<8x16xf32>
    %c0_10 = arith.constant 0 : index
    %c1 = arith.constant 1 : index
    %c0_11 = arith.constant 0 : index
    %c0_12 = arith.constant 0 : index
    %8 = vector.load %arg5[%c0_10, %c1, %c0_11, %c0_12] : memref<1x3x4x16xf32, #tpu.memory_space<vmem>>, vector<1x1x4x16xf32>
    %9 = vector.shape_cast %8 : vector<1x1x4x16xf32> to vector<4x16xf32>
    %cst = arith.constant dense<0.000000e+00> : vector<18x16xf32>
    %10 = tpu.matmul %0, %9, %cst {dimension_numbers = #tpu.dot_dimension_numbers<[1], [0], [0], [1], [0, 0, 1, 1], [], []>} : vector<18x4xf32>, vector<4x16xf32>, vector<18x16xf32> -> vector<18x16xf32>
    %c0_13 = arith.constant 0 : index
    %c2 = arith.constant 2 : index
    %c0_14 = arith.constant 0 : index
    %c0_15 = arith.constant 0 : index
    %11 = vector.load %arg5[%c0_13, %c2, %c0_14, %c0_15] : memref<1x3x4x16xf32, #tpu.memory_space<vmem>>, vector<1x1x4x16xf32>
    %12 = vector.shape_cast %11 : vector<1x1x4x16xf32> to vector<4x16xf32>
    %cst_16 = arith.constant dense<0.000000e+00> : vector<18x16xf32>
    %13 = tpu.matmul %0, %12, %cst_16 {dimension_numbers = #tpu.dot_dimension_numbers<[1], [0], [0], [1], [0, 0, 1, 1], [], []>} : vector<18x4xf32>, vector<4x16xf32>, vector<18x16xf32> -> vector<18x16xf32>
    %c0_17 = arith.constant 0 : index
    %c0_18 = arith.constant 0 : index
    %c0_19 = arith.constant 0 : index
    %c0_20 = arith.constant 0 : index
    %14 = vector.load %arg5[%c0_17, %c0_18, %c0_19, %c0_20] : memref<1x3x4x16xf32, #tpu.memory_space<vmem>>, vector<1x1x4x16xf32>
    %15 = vector.shape_cast %14 : vector<1x1x4x16xf32> to vector<4x16xf32>
    %cst_21 = arith.constant dense<0.000000e+00> : vector<18x16xf32>
    %16 = tpu.matmul %0, %15, %cst_21 {dimension_numbers = #tpu.dot_dimension_numbers<[1], [0], [0], [1], [0, 0, 1, 1], [], []>} : vector<18x4xf32>, vector<4x16xf32>, vector<18x16xf32> -> vector<18x16xf32>
    %17 = vector.extract_strided_slice %7 {offsets = [0, 0], sizes = [1, 16], strides = [1, 1]} : vector<8x16xf32> to vector<1x16xf32>
    %18 = vector.shape_cast %17 : vector<1x16xf32> to vector<16xf32>
    %19 = vector.shape_cast %18 : vector<16xf32> to vector<1x16xf32>
    %20 = vector.broadcast %19 : vector<1x16xf32> to vector<18x16xf32>
    %21 = arith.addf %16, %20 : vector<18x16xf32>
    %c0_22 = arith.constant 0 : index
    %c1_23 = arith.constant 1 : index
    %c0_24 = arith.constant 0 : index
    %c0_25 = arith.constant 0 : index
    %22 = vector.load %arg6[%c0_22, %c1_23, %c0_24, %c0_25] : memref<1x9x16x16xf32, #tpu.memory_space<vmem>>, vector<1x1x16x16xf32>
    %23 = vector.shape_cast %22 : vector<1x1x16x16xf32> to vector<16x16xf32>
    %cst_26 = arith.constant dense<0.000000e+00> : vector<18x16xf32>
    %24 = tpu.matmul %21, %23, %cst_26 {dimension_numbers = #tpu.dot_dimension_numbers<[1], [0], [0], [1], [0, 0, 1, 1], [], []>} : vector<18x16xf32>, vector<16x16xf32>, vector<18x16xf32> -> vector<18x16xf32>
    %cst_27 = arith.constant dense<0.000000e+00> : vector<18x16xf32>
    %25 = tpu.matmul %1, %24, %cst_27 {dimension_numbers = #tpu.dot_dimension_numbers<[1], [0], [0], [1], [0, 0, 1, 1], [], []>} : vector<18x18xf32>, vector<18x16xf32>, vector<18x16xf32> -> vector<18x16xf32>
    %26 = vector.extract_strided_slice %7 {offsets = [2, 0], sizes = [1, 16], strides = [1, 1]} : vector<8x16xf32> to vector<1x16xf32>
    %27 = vector.shape_cast %26 : vector<1x16xf32> to vector<16xf32>
    %28 = vector.shape_cast %27 : vector<16xf32> to vector<1x16xf32>
    %29 = vector.broadcast %28 : vector<1x16xf32> to vector<18x16xf32>
    %30 = arith.addf %25, %29 : vector<18x16xf32>
    %31 = math.tanh %30 : vector<18x16xf32>
    %32 = arith.mulf %31, %5 : vector<18x16xf32>
    %c0_28 = arith.constant 0 : index
    %c3 = arith.constant 3 : index
    %c0_29 = arith.constant 0 : index
    %c0_30 = arith.constant 0 : index
    %33 = vector.load %arg6[%c0_28, %c3, %c0_29, %c0_30] : memref<1x9x16x16xf32, #tpu.memory_space<vmem>>, vector<1x1x16x16xf32>
    %34 = vector.shape_cast %33 : vector<1x1x16x16xf32> to vector<16x16xf32>
    %cst_31 = arith.constant dense<0.000000e+00> : vector<18x16xf32>
    %35 = tpu.matmul %32, %34, %cst_31 {dimension_numbers = #tpu.dot_dimension_numbers<[1], [0], [0], [1], [0, 0, 1, 1], [], []>} : vector<18x16xf32>, vector<16x16xf32>, vector<18x16xf32> -> vector<18x16xf32>
    %36 = arith.addf %10, %35 : vector<18x16xf32>
    %c0_32 = arith.constant 0 : index
    %c5 = arith.constant 5 : index
    %c0_33 = arith.constant 0 : index
    %c0_34 = arith.constant 0 : index
    %37 = vector.load %arg6[%c0_32, %c5, %c0_33, %c0_34] : memref<1x9x16x16xf32, #tpu.memory_space<vmem>>, vector<1x1x16x16xf32>
    %38 = vector.shape_cast %37 : vector<1x1x16x16xf32> to vector<16x16xf32>
    %cst_35 = arith.constant dense<0.000000e+00> : vector<18x16xf32>
    %39 = tpu.matmul %32, %38, %cst_35 {dimension_numbers = #tpu.dot_dimension_numbers<[1], [0], [0], [1], [0, 0, 1, 1], [], []>} : vector<18x16xf32>, vector<16x16xf32>, vector<18x16xf32> -> vector<18x16xf32>
    %40 = arith.addf %13, %39 : vector<18x16xf32>
    %c0_36 = arith.constant 0 : index
    %c0_37 = arith.constant 0 : index
    %c0_38 = arith.constant 0 : index
    %c0_39 = arith.constant 0 : index
    %41 = vector.load %arg6[%c0_36, %c0_37, %c0_38, %c0_39] : memref<1x9x16x16xf32, #tpu.memory_space<vmem>>, vector<1x1x16x16xf32>
    %42 = vector.shape_cast %41 : vector<1x1x16x16xf32> to vector<16x16xf32>
    %cst_40 = arith.constant dense<0.000000e+00> : vector<18x16xf32>
    %43 = tpu.matmul %32, %42, %cst_40 {dimension_numbers = #tpu.dot_dimension_numbers<[1], [0], [0], [1], [0, 0, 1, 1], [], []>} : vector<18x16xf32>, vector<16x16xf32>, vector<18x16xf32> -> vector<18x16xf32>
    %44 = vector.extract_strided_slice %7 {offsets = [1, 0], sizes = [1, 16], strides = [1, 1]} : vector<8x16xf32> to vector<1x16xf32>
    %45 = vector.shape_cast %44 : vector<1x16xf32> to vector<16xf32>
    %46 = vector.shape_cast %45 : vector<16xf32> to vector<1x16xf32>
    %47 = vector.broadcast %46 : vector<1x16xf32> to vector<18x16xf32>
    %48 = arith.addf %43, %47 : vector<18x16xf32>
    %c0_41 = arith.constant 0 : index
    %c2_42 = arith.constant 2 : index
    %c0_43 = arith.constant 0 : index
    %c0_44 = arith.constant 0 : index
    %49 = vector.load %arg6[%c0_41, %c2_42, %c0_43, %c0_44] : memref<1x9x16x16xf32, #tpu.memory_space<vmem>>, vector<1x1x16x16xf32>
    %50 = vector.shape_cast %49 : vector<1x1x16x16xf32> to vector<16x16xf32>
    %cst_45 = arith.constant dense<0.000000e+00> : vector<18x16xf32>
    %51 = tpu.matmul %48, %50, %cst_45 {dimension_numbers = #tpu.dot_dimension_numbers<[1], [0], [0], [1], [0, 0, 1, 1], [], []>} : vector<18x16xf32>, vector<16x16xf32>, vector<18x16xf32> -> vector<18x16xf32>
    %cst_46 = arith.constant dense<0.000000e+00> : vector<18x16xf32>
    %52 = tpu.matmul %1, %51, %cst_46 {dimension_numbers = #tpu.dot_dimension_numbers<[1], [0], [0], [1], [0, 0, 1, 1], [], []>} : vector<18x18xf32>, vector<18x16xf32>, vector<18x16xf32> -> vector<18x16xf32>
    %53 = vector.extract_strided_slice %7 {offsets = [3, 0], sizes = [1, 16], strides = [1, 1]} : vector<8x16xf32> to vector<1x16xf32>
    %54 = vector.shape_cast %53 : vector<1x16xf32> to vector<16xf32>
    %55 = vector.shape_cast %54 : vector<16xf32> to vector<1x16xf32>
    %56 = vector.broadcast %55 : vector<1x16xf32> to vector<18x16xf32>
    %57 = arith.addf %52, %56 : vector<18x16xf32>
    %58 = math.tanh %57 : vector<18x16xf32>
    %59 = arith.mulf %58, %5 : vector<18x16xf32>
    %c0_47 = arith.constant 0 : index
    %c4 = arith.constant 4 : index
    %c0_48 = arith.constant 0 : index
    %c0_49 = arith.constant 0 : index
    %60 = vector.load %arg6[%c0_47, %c4, %c0_48, %c0_49] : memref<1x9x16x16xf32, #tpu.memory_space<vmem>>, vector<1x1x16x16xf32>
    %61 = vector.shape_cast %60 : vector<1x1x16x16xf32> to vector<16x16xf32>
    %cst_50 = arith.constant dense<0.000000e+00> : vector<18x16xf32>
    %62 = tpu.matmul %59, %61, %cst_50 {dimension_numbers = #tpu.dot_dimension_numbers<[1], [0], [0], [1], [0, 0, 1, 1], [], []>} : vector<18x16xf32>, vector<16x16xf32>, vector<18x16xf32> -> vector<18x16xf32>
    %63 = arith.addf %36, %62 : vector<18x16xf32>
    %c0_51 = arith.constant 0 : index
    %c6 = arith.constant 6 : index
    %c0_52 = arith.constant 0 : index
    %c0_53 = arith.constant 0 : index
    %64 = vector.load %arg6[%c0_51, %c6, %c0_52, %c0_53] : memref<1x9x16x16xf32, #tpu.memory_space<vmem>>, vector<1x1x16x16xf32>
    %65 = vector.shape_cast %64 : vector<1x1x16x16xf32> to vector<16x16xf32>
    %cst_54 = arith.constant dense<0.000000e+00> : vector<18x16xf32>
    %66 = tpu.matmul %59, %65, %cst_54 {dimension_numbers = #tpu.dot_dimension_numbers<[1], [0], [0], [1], [0, 0, 1, 1], [], []>} : vector<18x16xf32>, vector<16x16xf32>, vector<18x16xf32> -> vector<18x16xf32>
    %67 = arith.addf %40, %66 : vector<18x16xf32>
    %68 = vector.extract_strided_slice %7 {offsets = [4, 0], sizes = [1, 16], strides = [1, 1]} : vector<8x16xf32> to vector<1x16xf32>
    %69 = vector.shape_cast %68 : vector<1x16xf32> to vector<16xf32>
    %70 = vector.shape_cast %69 : vector<16xf32> to vector<1x16xf32>
    %71 = vector.broadcast %70 : vector<1x16xf32> to vector<18x16xf32>
    %72 = arith.addf %63, %71 : vector<18x16xf32>
    %73 = arith.negf %72 : vector<18x16xf32>
    %74 = math.exp %73 : vector<18x16xf32>
    %cst_55 = arith.constant 1.000000e+00 : f32
    %75 = vector.broadcast %cst_55 : f32 to vector<18x16xf32>
    %76 = arith.addf %75, %74 : vector<18x16xf32>
    %77 = arith.divf %75, %76 : vector<18x16xf32>
    %78 = vector.extract_strided_slice %7 {offsets = [5, 0], sizes = [1, 16], strides = [1, 1]} : vector<8x16xf32> to vector<1x16xf32>
    %79 = vector.shape_cast %78 : vector<1x16xf32> to vector<16xf32>
    %80 = vector.shape_cast %79 : vector<16xf32> to vector<1x16xf32>
    %81 = vector.broadcast %80 : vector<1x16xf32> to vector<18x16xf32>
    %82 = arith.addf %67, %81 : vector<18x16xf32>
    %83 = math.tanh %82 : vector<18x16xf32>
    %84 = arith.mulf %77, %83 : vector<18x16xf32>
    %cst_56 = arith.constant dense<0.000000e+00> : vector<2x16xf32>
    %85 = tpu.matmul %2, %84, %cst_56 {dimension_numbers = #tpu.dot_dimension_numbers<[1], [0], [0], [1], [0, 0, 1, 1], [], []>} : vector<2x18xf32>, vector<18x16xf32>, vector<2x16xf32> -> vector<2x16xf32>
    %86 = math.tanh %85 : vector<2x16xf32>
    %c0_57 = arith.constant 0 : index
    %c7 = arith.constant 7 : index
    %c0_58 = arith.constant 0 : index
    %c0_59 = arith.constant 0 : index
    %87 = vector.load %arg6[%c0_57, %c7, %c0_58, %c0_59] : memref<1x9x16x16xf32, #tpu.memory_space<vmem>>, vector<1x1x16x16xf32>
    %88 = vector.shape_cast %87 : vector<1x1x16x16xf32> to vector<16x16xf32>
    %cst_60 = arith.constant dense<0.000000e+00> : vector<2x16xf32>
    %89 = tpu.matmul %86, %88, %cst_60 {dimension_numbers = #tpu.dot_dimension_numbers<[1], [0], [0], [1], [0, 0, 1, 1], [], []>} : vector<2x16xf32>, vector<16x16xf32>, vector<2x16xf32> -> vector<2x16xf32>
    %90 = vector.extract_strided_slice %7 {offsets = [6, 0], sizes = [1, 16], strides = [1, 1]} : vector<8x16xf32> to vector<1x16xf32>
    %91 = vector.shape_cast %90 : vector<1x16xf32> to vector<16xf32>
    %92 = vector.shape_cast %91 : vector<16xf32> to vector<1x16xf32>
    %93 = vector.broadcast %92 : vector<1x16xf32> to vector<2x16xf32>
    %94 = arith.addf %89, %93 : vector<2x16xf32>
    %cst_61 = arith.constant 0.000000e+00 : f32
    %95 = vector.broadcast %cst_61 : f32 to vector<2x16xf32>
    %96 = arith.maximumf %94, %95 : vector<2x16xf32>
    %c0_62 = arith.constant 0 : index
    %c8 = arith.constant 8 : index
    %c0_63 = arith.constant 0 : index
    %c0_64 = arith.constant 0 : index
    %97 = vector.load %arg6[%c0_62, %c8, %c0_63, %c0_64] : memref<1x9x16x16xf32, #tpu.memory_space<vmem>>, vector<1x1x16x16xf32>
    %98 = vector.shape_cast %97 : vector<1x1x16x16xf32> to vector<16x16xf32>
    %cst_65 = arith.constant dense<0.000000e+00> : vector<2x16xf32>
    %99 = tpu.matmul %96, %98, %cst_65 {dimension_numbers = #tpu.dot_dimension_numbers<[1], [0], [0], [1], [0, 0, 1, 1], [], []>} : vector<2x16xf32>, vector<16x16xf32>, vector<2x16xf32> -> vector<2x16xf32>
    %100 = vector.extract_strided_slice %7 {offsets = [7, 0], sizes = [1, 16], strides = [1, 1]} : vector<8x16xf32> to vector<1x16xf32>
    %101 = vector.shape_cast %100 : vector<1x16xf32> to vector<16xf32>
    %102 = vector.shape_cast %101 : vector<16xf32> to vector<1x16xf32>
    %103 = vector.broadcast %102 : vector<1x16xf32> to vector<2x16xf32>
    %104 = arith.addf %99, %103 : vector<2x16xf32>
    %105 = vector.extract_strided_slice %104 {offsets = [0, 0], sizes = [2, 2], strides = [1, 1]} : vector<2x16xf32> to vector<2x2xf32>
    %106 = tpu.iota {dimensions = array<i32: 1>} : vector<2x2xi32>
    %c0_i32 = arith.constant 0 : i32
    %107 = vector.broadcast %c0_i32 : i32 to vector<2x2xi32>
    %108 = arith.cmpi eq, %106, %107 : vector<2x2xi32>
    %109 = arith.negf %105 : vector<2x2xf32>
    %110 = math.exp %109 : vector<2x2xf32>
    %cst_66 = arith.constant 1.000000e+00 : f32
    %111 = vector.broadcast %cst_66 : f32 to vector<2x2xf32>
    %112 = arith.addf %111, %110 : vector<2x2xf32>
    %113 = arith.divf %111, %112 : vector<2x2xf32>
    %114 = arith.select %108, %113, %105 : vector<2x2xi1>, vector<2x2xf32>
    %c0_67 = arith.constant 0 : index
    %c0_68 = arith.constant 0 : index
    %c0_69 = arith.constant 0 : index
    %115 = vector.load %arg8[%c0_67, %c0_68, %c0_69] : memref<1x2x2xf32, #tpu.memory_space<vmem>>, vector<1x2x2xf32>
    %116 = vector.shape_cast %115 : vector<1x2x2xf32> to vector<2x2xf32>
    %117 = vector.shape_cast %114 : vector<2x2xf32> to vector<1x2x2xf32>
    tpu.vector_store %arg8[%c0_67, %c0_68, %c0_69], %117 {strides = array<i32>} : memref<1x2x2xf32, #tpu.memory_space<vmem>>, vector<1x2x2xf32>,
    %c0_70 = arith.constant 0 : index
    %c0_71 = arith.constant 0 : index
    %c0_72 = arith.constant 0 : index
    %118 = vector.load %arg9[%c0_70, %c0_71, %c0_72] : memref<1x2x16xf32, #tpu.memory_space<vmem>>, vector<1x2x16xf32>
    %119 = vector.shape_cast %118 : vector<1x2x16xf32> to vector<2x16xf32>
    %120 = vector.shape_cast %86 : vector<2x16xf32> to vector<1x2x16xf32>
    tpu.vector_store %arg9[%c0_70, %c0_71, %c0_72], %120 {strides = array<i32>} : memref<1x2x16xf32, #tpu.memory_space<vmem>>, vector<1x2x16xf32>,
    return
  }
  func.func @transform_0(%arg0: i32) -> (i32, i32) {
    %c0_i32 = arith.constant 0 : i32
    %c0_i32_0 = arith.constant 0 : i32
    %c0_i32_1 = arith.constant 0 : i32
    return %c0_i32, %c0_i32_0 : i32, i32
  }
  func.func @transform_1(%arg0: i32) -> (i32, i32) {
    %c0_i32 = arith.constant 0 : i32
    %c0_i32_0 = arith.constant 0 : i32
    %c0_i32_1 = arith.constant 0 : i32
    return %c0_i32, %c0_i32_0 : i32, i32
  }
  func.func @transform_2(%arg0: i32) -> (i32, i32) {
    %c0_i32 = arith.constant 0 : i32
    %c0_i32_0 = arith.constant 0 : i32
    %c0_i32_1 = arith.constant 0 : i32
    return %c0_i32, %c0_i32_0 : i32, i32
  }
  func.func @transform_3(%arg0: i32) -> (i32, i32) {
    %c0_i32 = arith.constant 0 : i32
    %c0_i32_0 = arith.constant 0 : i32
    %c0_i32_1 = arith.constant 0 : i32
    return %c0_i32, %c0_i32_0 : i32, i32
  }
  func.func @transform_4(%arg0: i32) -> (i32, i32, i32, i32) {
    %c0_i32 = arith.constant 0 : i32
    %c0_i32_0 = arith.constant 0 : i32
    %c0_i32_1 = arith.constant 0 : i32
    %c0_i32_2 = arith.constant 0 : i32
    return %arg0, %c0_i32, %c0_i32_0, %c0_i32_1 : i32, i32, i32, i32
  }
  func.func @transform_5(%arg0: i32) -> (i32, i32, i32, i32) {
    %c0_i32 = arith.constant 0 : i32
    %c0_i32_0 = arith.constant 0 : i32
    %c0_i32_1 = arith.constant 0 : i32
    %c0_i32_2 = arith.constant 0 : i32
    return %arg0, %c0_i32, %c0_i32_0, %c0_i32_1 : i32, i32, i32, i32
  }
  func.func @transform_6(%arg0: i32) -> (i32, i32, i32) {
    %c0_i32 = arith.constant 0 : i32
    %c0_i32_0 = arith.constant 0 : i32
    %c0_i32_1 = arith.constant 0 : i32
    return %arg0, %c0_i32, %c0_i32_0 : i32, i32, i32
  }
  func.func @transform_7(%arg0: i32) -> (i32, i32, i32) {
    %c0_i32 = arith.constant 0 : i32
    %c0_i32_0 = arith.constant 0 : i32
    %c0_i32_1 = arith.constant 0 : i32
    return %arg0, %c0_i32, %c0_i32_0 : i32, i32, i32
  }
  func.func @transform_8(%arg0: i32) -> (i32, i32, i32) {
    %c0_i32 = arith.constant 0 : i32
    %c0_i32_0 = arith.constant 0 : i32
    %c0_i32_1 = arith.constant 0 : i32
    return %arg0, %c0_i32, %c0_i32_0 : i32, i32, i32
  }
}

</mosaic_0001>

<llo_original>
// kernel: _ensemble_forward_fused.1
$region0: #{_ensemble_forward_fused.1}
  #allocation0 [shape = 'u32[]', space=smem, size = 0x4, offset = 0x4, fixed_abs, tag = 'smem constant byte address 0x4 - core index']
  #allocation1 [shape = 'u32[144,128]{1,0:T(1,128)}', space=vmem, size = 0x12000, scoped, tag = 'internal scratch']
  %s0 = inlined_call_operand.vmem [shape: f32[18,4], index: 0, kind: input, shape index: {}]
  %s1 = inlined_call_operand.vmem [shape: f32[18,18], index: 1, kind: input, shape index: {}]
  %s2 = inlined_call_operand.vmem [shape: f32[18,1], index: 2, kind: input, shape index: {}]
  %s3 = inlined_call_operand.vmem [shape: f32[2,18], index: 3, kind: input, shape index: {}]
  %s4 = inlined_call_operand.vmem [shape: f32[2,3,4,16], index: 4, kind: input, shape index: {}]
  %s5 = inlined_call_operand.vmem [shape: f32[2,9,16,16], index: 5, kind: input, shape index: {}]
  %s6 = inlined_call_operand.vmem [shape: f32[2,8,16], index: 6, kind: input, shape index: {}]
  %s7 = inlined_call_operand.hbm [shape: f32[2,2,2], index: 7, kind: output, shape index: {0}]
  %s8 = inlined_call_operand.hbm [shape: f32[2,2,16], index: 8, kind: output, shape index: {1}]
  %9 = xla_tuple %s7, %s8
  %s10 = sld [smem:[#allocation0]]
  $region69: #{_ensemble_forward_fused.1} parent=0
    _
  %s12 = ssub.s32 1, %s10
  %s13 = scalar_select 0, %s12, %s10
  $region1: #{_ensemble_forward_fused.1} parent=0
    #allocation2 [shape = 'u8[2048]{0}', space=vmem, size = 0x800, scoped, tag = 'output window, operand 0']
    #allocation3 [shape = 's32[2]{0}', space=sflag, size = 0x8, scoped, tag = 'scoped memory for _ensemble_forward_fused.1']
    #allocation4 [shape = 'u8[2048]{0}', space=vmem, size = 0x800, scoped, tag = 'output window, operand 1']
    #allocation5 [shape = 's32[2]{0}', space=sflag, size = 0x8, scoped, tag = 'scoped memory for _ensemble_forward_fused.1']
    %14 = vsyncpa [#allocation3], 0
    %s15 = scalar_lea.sflag [#allocation3], 1
    %16 = vsyncpa %s15, 0
    %17 = vsyncpa [#allocation5], 0
    %s18 = scalar_lea.sflag [#allocation5], 1
    %19 = vsyncpa %s18, 0
    loop: start=0, step=1, limit=4
    $region2: #{_ensemble_forward_fused.1} parent=1 // loop_pre_header
      _
    $region3: #{_ensemble_forward_fused.1} parent=1 // loop_header
      %s21 = sphi 0, %s25
      %p22 = scmp.ge.s32.totalorder %s21, 4
      %s29 = sphi 0, %s29
      %s31 = sphi 0, %s29
      %s32 = sphi 0, %s31
      %s46 = sphi 0, %s32
      %s50 = sphi 0, %s50
      %s52 = sphi 0, %s50
      %s53 = sphi 0, %s52
      %s67 = sphi 0, %s53
      %s71 = sphi 0, %s71
      %s73 = sphi 0, %s71
      %s74 = sphi 0, %s73
      %s88 = sphi 0, %s74
      %s92 = sphi 0, %s92
      %s94 = sphi 0, %s92
      %s95 = sphi 0, %s94
      %s109 = sphi 0, %s95
      %s115 = sphi 0, %s117
      %s118 = sphi 0, %s115
      %s119 = sphi 0, %s118
      %s135 = sphi 0, %s119
      %s141 = sphi 0, %s143
      %s144 = sphi 0, %s141
      %s145 = sphi 0, %s144
      %s161 = sphi 0, %s145
      %s167 = sphi 0, %s169
      %s170 = sphi 0, %s167
      %s171 = sphi 0, %s170
      %s187 = sphi 0, %s171
      %s193 = sphi 0, %s195
      %s196 = sphi 0, %s193
      %s197 = sphi 0, %s196
      %s213 = sphi 0, %s197
      %s219 = sphi 0, %s221
      %s222 = sphi 0, %s219
      %s223 = sphi 0, %s222
      %s239 = sphi 0, %s223
    $region4: #{_ensemble_forward_fused.1} parent=1 // loop_header_branch
      %24 = sbr.rel (%p22) target = $region8
    $region5: #{_ensemble_forward_fused.1} parent=1 // loop_body
      %s26 = ssub.s32 %s21, 1
      %s27 = ssub.s32 %s21, 2
      %s28 = sadd.s32 %s21, 1
      %s30 = sadd.s32 %s29, 1
      %p33 = scmp.eq.s32.totalorder %s21, 1
      %p34 = scmp.ne.s32.totalorder %s29, %s31
      %p35 = scmp.eq.s32.totalorder %s21, 0
      %p36 = por %p34, %p35
      %p37 = scmp.ne.s32.totalorder %s29, %s31
      %p38 = scmp.eq.s32.totalorder %s26, 1
      %p39 = por %p37, %p38
      %p40 = scmp.ne.s32.totalorder %s31, %s32
      %p41 = scmp.eq.s32.totalorder %s26, 0
      %p42 = por %p40, %p41
      %p43 = scmp.ne.s32.totalorder %s31, %s32
      %p44 = scmp.eq.s32.totalorder %s27, 1
      %p45 = por %p43, %p44
      %p47 = scmp.ne.s32.totalorder %s32, %s46
      %p48 = scmp.eq.s32.totalorder %s27, 0
      %p49 = por %p47, %p48
      %s51 = sadd.s32 %s50, 1
      %p54 = scmp.eq.s32.totalorder %s21, 1
      %p55 = scmp.ne.s32.totalorder %s50, %s52
      %p56 = scmp.eq.s32.totalorder %s21, 0
      %p57 = por %p55, %p56
      %p58 = scmp.ne.s32.totalorder %s50, %s52
      %p59 = scmp.eq.s32.totalorder %s26, 1
      %p60 = por %p58, %p59
      %p61 = scmp.ne.s32.totalorder %s52, %s53
      %p62 = scmp.eq.s32.totalorder %s26, 0
      %p63 = por %p61, %p62
      %p64 = scmp.ne.s32.totalorder %s52, %s53
      %p65 = scmp.eq.s32.totalorder %s27, 1
      %p66 = por %p64, %p65
      %p68 = scmp.ne.s32.totalorder %s53, %s67
      %p69 = scmp.eq.s32.totalorder %s27, 0
      %p70 = por %p68, %p69
      %s72 = sadd.s32 %s71, 1
      %p75 = scmp.eq.s32.totalorder %s21, 1
      %p76 = scmp.ne.s32.totalorder %s71, %s73
      %p77 = scmp.eq.s32.totalorder %s21, 0
      %p78 = por %p76, %p77
      %p79 = scmp.ne.s32.totalorder %s71, %s73
      %p80 = scmp.eq.s32.totalorder %s26, 1
      %p81 = por %p79, %p80
      %p82 = scmp.ne.s32.totalorder %s73, %s74
      %p83 = scmp.eq.s32.totalorder %s26, 0
      %p84 = por %p82, %p83
      %p85 = scmp.ne.s32.totalorder %s73, %s74
      %p86 = scmp.eq.s32.totalorder %s27, 1
      %p87 = por %p85, %p86
      %p89 = scmp.ne.s32.totalorder %s74, %s88
      %p90 = scmp.eq.s32.totalorder %s27, 0
      %p91 = por %p89, %p90
      %s93 = sadd.s32 %s92, 1
      %p96 = scmp.eq.s32.totalorder %s21, 1
      %p97 = scmp.ne.s32.totalorder %s92, %s94
      %p98 = scmp.eq.s32.totalorder %s21, 0
      %p99 = por %p97, %p98
      %p100 = scmp.ne.s32.totalorder %s92, %s94
      %p101 = scmp.eq.s32.totalorder %s26, 1
      %p102 = por %p100, %p101
      %p103 = scmp.ne.s32.totalorder %s94, %s95
      %p104 = scmp.eq.s32.totalorder %s26, 0
      %p105 = por %p103, %p104
      %p106 = scmp.ne.s32.totalorder %s94, %s95
      %p107 = scmp.eq.s32.totalorder %s27, 1
      %p108 = por %p106, %p107
      %p110 = scmp.ne.s32.totalorder %s95, %s109
      %p111 = scmp.eq.s32.totalorder %s27, 0
      %p112 = por %p110, %p111
      %s113 = ssub.s32 %s21, %s28
      %p114 = scmp.eq.s32.totalorder %s113, 0
      %s116 = sadd.s32 %s115, 1
      %s117 = scalar_select %p114, %s115, %s116
      %p120 = pneg %p114
      %p121 = scmp.eq.s32.totalorder %s21, 1
      %p122 = por %p120, %p121
      %p123 = scmp.ne.s32.totalorder %s115, %s118
      %p124 = scmp.eq.s32.totalorder %s21, 0
      %p125 = por %p123, %p124
      %p126 = scmp.ne.s32.totalorder %s115, %s118
      %p127 = scmp.eq.s32.totalorder %s26, 1
      %p128 = por %p126, %p127
      %p129 = scmp.ne.s32.totalorder %s118, %s119
      %p130 = scmp.eq.s32.totalorder %s26, 0
      %p131 = por %p129, %p130
      %p132 = scmp.ne.s32.totalorder %s118, %s119
      %p133 = scmp.eq.s32.totalorder %s27, 1
      %p134 = por %p132, %p133
      %p136 = scmp.ne.s32.totalorder %s119, %s135
      %p137 = scmp.eq.s32.totalorder %s27, 0
      %p138 = por %p136, %p137
      %s139 = ssub.s32 %s21, %s28
      %p140 = scmp.eq.s32.totalorder %s139, 0
      %s142 = sadd.s32 %s141, 1
      %s143 = scalar_select %p140, %s141, %s142
      %p146 = pneg %p140
      %p147 = scmp.eq.s32.totalorder %s21, 1
      %p148 = por %p146, %p147
      %p149 = scmp.ne.s32.totalorder %s141, %s144
      %p150 = scmp.eq.s32.totalorder %s21, 0
      %p151 = por %p149, %p150
      %p152 = scmp.ne.s32.totalorder %s141, %s144
      %p153 = scmp.eq.s32.totalorder %s26, 1
      %p154 = por %p152, %p153
      %p155 = scmp.ne.s32.totalorder %s144, %s145
      %p156 = scmp.eq.s32.totalorder %s26, 0
      %p157 = por %p155, %p156
      %p158 = scmp.ne.s32.totalorder %s144, %s145
      %p159 = scmp.eq.s32.totalorder %s27, 1
      %p160 = por %p158, %p159
      %p162 = scmp.ne.s32.totalorder %s145, %s161
      %p163 = scmp.eq.s32.totalorder %s27, 0
      %p164 = por %p162, %p163
      %s165 = ssub.s32 %s21, %s28
      %p166 = scmp.eq.s32.totalorder %s165, 0
      %s168 = sadd.s32 %s167, 1
      %s169 = scalar_select %p166, %s167, %s168
      %p172 = pneg %p166
      %p173 = scmp.eq.s32.totalorder %s21, 1
      %p174 = por %p172, %p173
      %p175 = scmp.ne.s32.totalorder %s167, %s170
      %p176 = scmp.eq.s32.totalorder %s21, 0
      %p177 = por %p175, %p176
      %p178 = scmp.ne.s32.totalorder %s167, %s170
      %p179 = scmp.eq.s32.totalorder %s26, 1
      %p180 = por %p178, %p179
      %p181 = scmp.ne.s32.totalorder %s170, %s171
      %p182 = scmp.eq.s32.totalorder %s26, 0
      %p183 = por %p181, %p182
      %p184 = scmp.ne.s32.totalorder %s170, %s171
      %p185 = scmp.eq.s32.totalorder %s27, 1
      %p186 = por %p184, %p185
      %p188 = scmp.ne.s32.totalorder %s171, %s187
      %p189 = scmp.eq.s32.totalorder %s27, 0
      %p190 = por %p188, %p189
      %s191 = ssub.s32 %s21, %s28
      %p192 = scmp.eq.s32.totalorder %s191, 0
      %s194 = sadd.s32 %s193, 1
      %s195 = scalar_select %p192, %s193, %s194
      %p198 = pneg %p192
      %p199 = scmp.eq.s32.totalorder %s21, 1
      %p200 = por %p198, %p199
      %p201 = scmp.ne.s32.totalorder %s193, %s196
      %p202 = scmp.eq.s32.totalorder %s21, 0
      %p203 = por %p201, %p202
      %p204 = scmp.ne.s32.totalorder %s193, %s196
      %p205 = scmp.eq.s32.totalorder %s26, 1
      %p206 = por %p204, %p205
      %p207 = scmp.ne.s32.totalorder %s196, %s197
      %p208 = scmp.eq.s32.totalorder %s26, 0
      %p209 = por %p207, %p208
      %p210 = scmp.ne.s32.totalorder %s196, %s197
      %p211 = scmp.eq.s32.totalorder %s27, 1
      %p212 = por %p210, %p211
      %p214 = scmp.ne.s32.totalorder %s197, %s213
      %p215 = scmp.eq.s32.totalorder %s27, 0
      %p216 = por %p214, %p215
      %s217 = ssub.s32 %s21, %s28
      %p218 = scmp.eq.s32.totalorder %s217, 0
      %s220 = sadd.s32 %s219, 1
      %s221 = scalar_select %p218, %s219, %s220
      %p224 = pneg %p218
      %p225 = scmp.eq.s32.totalorder %s21, 1
      %p226 = por %p224, %p225
      %p227 = scmp.ne.s32.totalorder %s219, %s222
      %p228 = scmp.eq.s32.totalorder %s21, 0
      %p229 = por %p227, %p228
      %p230 = scmp.ne.s32.totalorder %s219, %s222
      %p231 = scmp.eq.s32.totalorder %s26, 1
      %p232 = por %p230, %p231
      %p233 = scmp.ne.s32.totalorder %s222, %s223
      %p234 = scmp.eq.s32.totalorder %s26, 0
      %p235 = por %p233, %p234
      %p236 = scmp.ne.s32.totalorder %s222, %s223
      %p237 = scmp.eq.s32.totalorder %s27, 1
      %p238 = por %p236, %p237
      %p240 = scmp.ne.s32.totalorder %s223, %s239
      %p241 = scmp.eq.s32.totalorder %s27, 0
      %p242 = por %p240, %p241
      %p243 = scmp.le.s32.totalorder 1, %s21
      %p244 = scmp.lt.s32.totalorder %s21, 3
      %p245 = pnand %p243, %p244
      %p246 = pneg %p245
      // Predicated region
      $region9: #{_ensemble_forward_fused.1} parent=5 // pred_check
        _
      $region10: #{_ensemble_forward_fused.1} parent=5 // pred_check_branch
        %248 = sbr.rel (%p245) target = $region12
      $region11: #{_ensemble_forward_fused.1} parent=5 // pred_region
        %s249 = ssub.s32 %s21, 1
        // Predicated region
        $region13: #{_ensemble_forward_fused.1} parent=11 // pred_check
          %p250 = pneg %p42
        $region14: #{_ensemble_forward_fused.1} parent=11 // pred_check_branch
          %252 = sbr.rel (%p250) target = $region16
        $region15: #{_ensemble_forward_fused.1} parent=11 // pred_region
          _
        $region16: #{_ensemble_forward_fused.1} parent=11 // pred_fallthru
          _
        // Predicated region
        $region17: #{_ensemble_forward_fused.1} parent=11 // pred_check
          %p253 = pneg %p63
        $region18: #{_ensemble_forward_fused.1} parent=11 // pred_check_branch
          %255 = sbr.rel (%p253) target = $region20
        $region19: #{_ensemble_forward_fused.1} parent=11 // pred_region
          _
        $region20: #{_ensemble_forward_fused.1} parent=11 // pred_fallthru
          _
        // Predicated region
        $region21: #{_ensemble_forward_fused.1} parent=11 // pred_check
          %p256 = pneg %p84
        $region22: #{_ensemble_forward_fused.1} parent=11 // pred_check_branch
          %258 = sbr.rel (%p256) target = $region24
        $region23: #{_ensemble_forward_fused.1} parent=11 // pred_region
          _
        $region24: #{_ensemble_forward_fused.1} parent=11 // pred_fallthru
          _
        // Predicated region
        $region25: #{_ensemble_forward_fused.1} parent=11 // pred_check
          %p259 = pneg %p105
        $region26: #{_ensemble_forward_fused.1} parent=11 // pred_check_branch
          %261 = sbr.rel (%p259) target = $region28
        $region27: #{_ensemble_forward_fused.1} parent=11 // pred_region
          _
        $region28: #{_ensemble_forward_fused.1} parent=11 // pred_fallthru
          _
      $region12: #{_ensemble_forward_fused.1} parent=5 // pred_fallthru
        _
      %p262 = scmp.lt.s32.totalorder %s21, 2
      // Predicated region
      $region29: #{_ensemble_forward_fused.1} parent=5 // pred_check
        %p263 = pneg %p262
      $region30: #{_ensemble_forward_fused.1} parent=5 // pred_check_branch
        %265 = sbr.rel (%p263) target = $region32
      $region31: #{_ensemble_forward_fused.1} parent=5 // pred_region
        // Predicated region
        $region33: #{_ensemble_forward_fused.1} parent=31 // pred_check
          %p266 = pneg %p125
        $region34: #{_ensemble_forward_fused.1} parent=31 // pred_check_branch
          %268 = sbr.rel (%p266) target = $region36
        $region35: #{_ensemble_forward_fused.1} parent=31 // pred_region
          %p269 = scmp.lt.s32.totalorder %s21, 1
          %s270 = scalar_select %p269, %s21, 1
          %s271 = smul.addr %s270, 3
          %s272 = smul.addr %s271, 4
          %s273 = scalar_lea.vmem %s4, %s272
        $region36: #{_ensemble_forward_fused.1} parent=31 // pred_fallthru
          _
        // Predicated region
        $region37: #{_ensemble_forward_fused.1} parent=31 // pred_check
          %p274 = pneg %p151
        $region38: #{_ensemble_forward_fused.1} parent=31 // pred_check_branch
          %276 = sbr.rel (%p274) target = $region40
        $region39: #{_ensemble_forward_fused.1} parent=31 // pred_region
          %p277 = scmp.lt.s32.totalorder %s21, 1
          %s278 = scalar_select %p277, %s21, 1
          %s279 = smul.addr %s278, 18
          %s280 = smul.addr %s279, 8
          %s281 = scalar_lea.vmem %s5, %s280
        $region40: #{_ensemble_forward_fused.1} parent=31 // pred_fallthru
          _
        // Predicated region
        $region41: #{_ensemble_forward_fused.1} parent=31 // pred_check
          %p282 = pneg %p177
        $region42: #{_ensemble_forward_fused.1} parent=31 // pred_check_branch
          %284 = sbr.rel (%p282) target = $region44
        $region43: #{_ensemble_forward_fused.1} parent=31 // pred_region
          %p285 = scmp.lt.s32.totalorder %s21, 1
          %s286 = scalar_select %p285, %s21, 1
          %s287 = smul.addr %s286, 8
          %s288 = scalar_lea.vmem %s6, %s287
        $region44: #{_ensemble_forward_fused.1} parent=31 // pred_fallthru
          _
      $region32: #{_ensemble_forward_fused.1} parent=5 // pred_fallthru
        _
      %p289 = scmp.le.s32.totalorder 1, %s21
      %p290 = scmp.lt.s32.totalorder %s21, 3
      %p291 = pnand %p289, %p290
      %p292 = pneg %p291
      // Predicated region
      $region45: #{_ensemble_forward_fused.1} parent=5 // pred_check
        _
      $region46: #{_ensemble_forward_fused.1} parent=5 // pred_check_branch
        %294 = sbr.rel (%p291) target = $region48
      $region47: #{_ensemble_forward_fused.1} parent=5 // pred_region
        %s295 = ssub.s32 %s21, 1
        %p296 = pneg %p42
        %p297 = pneg %p39
        %p298 = pneg %p63
        %p299 = pneg %p60
        %p300 = pneg %p84
        %p301 = pneg %p81
        %p302 = pneg %p105
        %p303 = pneg %p102
        %p304 = scmp.lt.s32.totalorder %s26, 1
        %s305 = scalar_select %p304, %s26, 1
        %s306 = smul.addr %s305, 3
        %s307 = smul.addr %s306, 4
        %s308 = scalar_lea.vmem %s4, %s307
        %p309 = pneg %p131
        %p310 = pneg %p128
        %p311 = scmp.lt.s32.totalorder %s26, 1
        %s312 = scalar_select %p311, %s26, 1
        %s313 = smul.addr %s312, 18
        %s314 = smul.addr %s313, 8
        %s315 = scalar_lea.vmem %s5, %s314
        %p316 = pneg %p157
        %p317 = pneg %p154
        %p318 = scmp.lt.s32.totalorder %s26, 1
        %s319 = scalar_select %p318, %s26, 1
        %s320 = smul.addr %s319, 8
        %s321 = scalar_lea.vmem %s6, %s320
        %p322 = pneg %p183
        %p323 = pneg %p180
        %p324 = pneg %p209
        %p325 = pneg %p206
        %s326 = sand.u32 %s196, 1
        %s327 = scalar_lea.sflag [#allocation3], %s326
        %s328 = sand.u32 %s196, 1
        %s329 = smul.addr %s328, 2
        %s330 = scalar_lea.vmem [#allocation2], %s329
        %p331 = pneg %p235
        %p332 = pneg %p232
        %s333 = sand.u32 %s222, 1
        %s334 = scalar_lea.sflag [#allocation5], %s333
        %s335 = sand.u32 %s222, 1
        %s336 = smul.addr %s335, 2
        %s337 = scalar_lea.vmem [#allocation4], %s336
        %p338 = scmp.lt.s32.totalorder %s26, 1
        %s339 = scalar_select %p338, %s26, 1
        %s340 = smul.addr %s339, 3
        %s341 = smul.addr %s340, 4
        %s342 = scalar_lea.vmem %s4, %s341
        %p343 = scmp.lt.s32.totalorder %s26, 1
        %s344 = scalar_select %p343, %s26, 1
        %s345 = smul.addr %s344, 18
        %s346 = smul.addr %s345, 8
        %s347 = scalar_lea.vmem %s5, %s346
        %p348 = scmp.lt.s32.totalorder %s26, 1
        %s349 = scalar_select %p348, %s26, 1
        %s350 = smul.addr %s349, 8
        %s351 = scalar_lea.vmem %s6, %s350
        %v352 = vld [vmem:[%s0] sm:$0xff]
        %v353 = vld [vmem:[%s0 + $0x8] sm:$0xff]
        %v354 = vld [vmem:[%s0 + $0x10] sm:$0x3]
        %v355 = vld [vmem:[%s1] sm:$0xff]
        %v356 = vld [vmem:[%s1 + $0x8] sm:$0xff]
        %v357 = vld [vmem:[%s1 + $0x10] sm:$0x3]
        %v358 = vld [vmem:[%s3] sm:$0x3]
        %v359 = vld [vmem:[%s2] sm:$0xff]
        %v360 = vld [vmem:[%s2 + $0x8] sm:$0xff]
        %v361 = vld [vmem:[%s2 + $0x10] sm:$0x3]
        %363 = vset.pattern.permute.xlu0 0
        %364 = vperm.xlu0 %363, %v359
        %v365 = vpop.permute.xlu0 %364
        %368 = vset.pattern.permute.xlu0 0
        %369 = vperm.xlu0 %368, %v360
        %v370 = vpop.permute.xlu0 %369
        %373 = vset.pattern.permute.xlu0 0
        %374 = vperm.xlu0 %373, %v361
        %v375 = vpop.permute.xlu0 %374
        %v377 = vld [vmem:[%s351] sm:$0xff]
        %s378 = scalar_lea.vmem %s342, 4
        %v379 = vld [vmem:[%s378] sm:$0xf]
        %s380 = scalar_lea.vmem %s342, 8
        %v381 = vld [vmem:[%s380] sm:$0xf]
        %v382 = vld [vmem:[%s342] sm:$0xf]
        %v383 = vlaneseq
        %v384 = vshrl.u32 %v383, 7
        %v385 = vsub.s32 0, %v384
        %v386 = vrot.slane %v377, %v385
        %vm387 = vcmask 31744
        %v389 = vsel %vm387, %v352, 0
        %v392 = vsel %vm387, %v353, 0
        %v395 = vsel %vm387, %v354, 0
        %vm397 = vcmask 1043456
        %v399 = vsel %vm397, %v382, 0
        %401 = vmatprep.subr.mxu0 0.0
        %402 = vmatpush1.msra.mxu0 0.0
        %403 = vmatprep.subr.mxu0 0.0
        %404 = vmatpush1.msra.mxu0 0.0
        %405 = vmatprep.subr.mxu0 0.0
        %406 = vmatpush1.msra.mxu0 0.0
        %407 = vmatprep.subr.mxu0 0.0
        %408 = vmatpush1.msra.mxu0 0.0
        %409 = vmatprep.subr.mxu0 0.0
        %410 = vmatpush1.msra.mxu0 0.0
        %411 = vmatprep.subr.mxu0 0.0
        %412 = vmatpush1.msra.mxu0 0.0
        %413 = vmatprep.subr.mxu0 0.0
        %414 = vmatpush1.msra.mxu0 0.0
        %415 = vmatprep.subr.mxu0 0.0
        %416 = vmatpush1.msra.mxu0 0.0
        %417 = vmatprep.subr.mxu0 0.0
        %418 = vmatpush1.msra.mxu0 0.0
        %419 = vmatprep.subr.mxu0 0.0
        %420 = vmatpush1.msra.mxu0 0.0
        %421 = vmatprep.subr.mxu0 0.0
        %422 = vmatpush1.msra.mxu0 0.0
        %423 = vmatprep.subr.mxu0 0.0
        %424 = vmatpush1.msra.mxu0 0.0
        %425 = vmatprep.subr.mxu0 0.0
        %426 = vmatpush1.msra.mxu0 0.0
        %427 = vmatprep.subr.mxu0 0.0
        %428 = vmatpush1.msra.mxu0 0.0
        %429 = vmatprep.subr.mxu0 0.0
        %430 = vmatpush1.msra.mxu0 0.0
        %431 = vmatprep.subr.mxu0 0.0
        %432 = vmatpush1.msra.mxu0 %v399
        %433 = vmatprep.subr.mxu0 0.0
        %434 = vmatpush2.msra.mxu0 0.0
        %435 = vmatprep.subr.mxu0 0.0
        %436 = vmatpush2.msra.mxu0 0.0
        %437 = vmatprep.subr.mxu0 0.0
        %438 = vmatpush2.msra.mxu0 0.0
        %439 = vmatprep.subr.mxu0 0.0
        %440 = vmatpush2.msra.mxu0 0.0
        %441 = vmatprep.subr.mxu0 0.0
        %442 = vmatpush2.msra.mxu0 0.0
        %443 = vmatprep.subr.mxu0 0.0
        %444 = vmatpush2.msra.mxu0 0.0
        %445 = vmatprep.subr.mxu0 0.0
        %446 = vmatpush2.msra.mxu0 0.0
        %447 = vmatprep.subr.mxu0 0.0
        %448 = vmatpush2.msra.mxu0 0.0
        %449 = vmatprep.subr.mxu0 0.0
        %450 = vmatpush2.msra.mxu0 0.0
        %451 = vmatprep.subr.mxu0 0.0
        %452 = vmatpush2.msra.mxu0 0.0
        %453 = vmatprep.subr.mxu0 0.0
        %454 = vmatpush2.msra.mxu0 0.0
        %455 = vmatprep.subr.mxu0 0.0
        %456 = vmatpush2.msra.mxu0 0.0
        %457 = vmatprep.subr.mxu0 0.0
        %458 = vmatpush2.msra.mxu0 0.0
        %459 = vmatprep.subr.mxu0 0.0
        %460 = vmatpush2.msra.mxu0 0.0
        %461 = vmatprep.subr.mxu0 0.0
        %462 = vmatpush2.msra.mxu0 0.0
        %463 = vmatprep.subr.mxu0 0.0
        %464 = vmatpush2.msra.mxu0 0.0
        %465 = vmatprep.mubr.f32.mxu0 0.0
        %466 = vmatmul.mubr.f32.gmra.mxu0 %v389
        %v467 = vpop.f32.mrf.mxu0
        %v468 = vadd.f32 %v386, %v467
        %v469 = vpop.f32.mrf.mxu0
        %470 = vmatprep.mubr.f32.mxu0 0.0
        %471 = vmatmul.mubr.f32.gmra.mxu0 %v392
        %v472 = vpop.f32.mrf.mxu0
        %v473 = vadd.f32 %v386, %v472
        %v474 = vpop.f32.mrf.mxu0
        %475 = vmatprep.mubr.f32.mxu0 0.0
        %476 = vmatmul.mubr.f32.gmra.mxu0 %v395
        %v477 = vpop.f32.mrf.mxu0
        %v478 = vadd.f32 %v386, %v477
        %v479 = vpop.f32.mrf.mxu0
        %480 = vdwg.mxu0
        %s481 = scalar_lea.vmem %s347, 16
        %v482 = vld [vmem:[%s481] sm:$0xff]
        %v483 = vld [vmem:[%s481 + $0x8] sm:$0xff]
        %vm484 = vcmask 130048
        %v486 = vsel %vm484, %v468, 0
        %v489 = vsel %vm484, %v473, 0
        %v492 = vsel %vm484, %v478, 0
        %494 = vmatprep.subr.mxu0 0.0
        %495 = vmatpush1.msra.mxu0 0.0
        %496 = vmatprep.subr.mxu0 0.0
        %497 = vmatpush1.msra.mxu0 0.0
        %498 = vmatprep.subr.mxu0 0.0
        %499 = vmatpush1.msra.mxu0 0.0
        %500 = vmatprep.subr.mxu0 0.0
        %501 = vmatpush1.msra.mxu0 0.0
        %502 = vmatprep.subr.mxu0 0.0
        %503 = vmatpush1.msra.mxu0 0.0
        %504 = vmatprep.subr.mxu0 0.0
        %505 = vmatpush1.msra.mxu0 0.0
        %506 = vmatprep.subr.mxu0 0.0
        %507 = vmatpush1.msra.mxu0 0.0
        %508 = vmatprep.subr.mxu0 0.0
        %509 = vmatpush1.msra.mxu0 0.0
        %510 = vmatprep.subr.mxu0 0.0
        %511 = vmatpush1.msra.mxu0 0.0
        %512 = vmatprep.subr.mxu0 0.0
        %513 = vmatpush1.msra.mxu0 0.0
        %514 = vmatprep.subr.mxu0 0.0
        %515 = vmatpush1.msra.mxu0 0.0
        %516 = vmatprep.subr.mxu0 0.0
        %517 = vmatpush1.msra.mxu0 0.0
        %518 = vmatprep.subr.mxu0 0.0
        %519 = vmatpush1.msra.mxu0 0.0
        %520 = vmatprep.subr.mxu0 0.0
        %521 = vmatpush1.msra.mxu0 0.0
        %522 = vmatprep.subr.mxu0 0.0
        %523 = vmatpush1.msra.mxu0 %v483
        %524 = vmatprep.subr.mxu0 0.0
        %525 = vmatpush1.msra.mxu0 %v482
        %526 = vmatprep.subr.mxu0 0.0
        %527 = vmatpush2.msra.mxu0 0.0
        %528 = vmatprep.subr.mxu0 0.0
        %529 = vmatpush2.msra.mxu0 0.0
        %530 = vmatprep.subr.mxu0 0.0
        %531 = vmatpush2.msra.mxu0 0.0
        %532 = vmatprep.subr.mxu0 0.0
        %533 = vmatpush2.msra.mxu0 0.0
        %534 = vmatprep.subr.mxu0 0.0
        %535 = vmatpush2.msra.mxu0 0.0
        %536 = vmatprep.subr.mxu0 0.0
        %537 = vmatpush2.msra.mxu0 0.0
        %538 = vmatprep.subr.mxu0 0.0
        %539 = vmatpush2.msra.mxu0 0.0
        %540 = vmatprep.subr.mxu0 0.0
        %541 = vmatpush2.msra.mxu0 0.0
        %542 = vmatprep.subr.mxu0 0.0
        %543 = vmatpush2.msra.mxu0 0.0
        %544 = vmatprep.subr.mxu0 0.0
        %545 = vmatpush2.msra.mxu0 0.0
        %546 = vmatprep.subr.mxu0 0.0
        %547 = vmatpush2.msra.mxu0 0.0
        %548 = vmatprep.subr.mxu0 0.0
        %549 = vmatpush2.msra.mxu0 0.0
        %550 = vmatprep.subr.mxu0 0.0
        %551 = vmatpush2.msra.mxu0 0.0
        %552 = vmatprep.subr.mxu0 0.0
        %553 = vmatpush2.msra.mxu0 0.0
        %554 = vmatprep.subr.mxu0 0.0
        %555 = vmatpush2.msra.mxu0 0.0
        %556 = vmatprep.subr.mxu0 0.0
        %557 = vmatpush2.msra.mxu0 0.0
        %558 = vmatprep.mubr.f32.mxu0 0.0
        %559 = vmatmul.mubr.f32.gmra.mxu0 %v486
        %v560 = vpop.f32.mrf.mxu0
        %v561 = vadd.f32 0.0, %v560
        %v562 = vpop.f32.mrf.mxu0
        %563 = vmatprep.mubr.f32.mxu0 0.0
        %564 = vmatmul.mubr.f32.gmra.mxu0 %v489
        %v565 = vpop.f32.mrf.mxu0
        %v566 = vadd.f32 0.0, %v565
        %v567 = vpop.f32.mrf.mxu0
        %568 = vmatprep.mubr.f32.mxu0 0.0
        %569 = vmatmul.mubr.f32.gmra.mxu0 %v492
        %v570 = vpop.f32.mrf.mxu0
        %v571 = vadd.f32 0.0, %v570
        %v572 = vpop.f32.mrf.mxu0
        %573 = vdwg.mxu0
        %v574 = vlaneseq
        %v575 = vshrl.u32 %v574, 7
        %v576 = vsub.s32 2, %v575
        %v577 = vrot.slane %v377, %v576
        %vm578 = vcmask 146432
        %v580 = vsel %vm578, %v355, 0
        %v583 = vsel %vm578, %v356, 0
        %v586 = vsel %vm578, %v357, 0
        %vm588 = vcmask 1041408
        %v590 = vsel %vm588, %v571, 0
        %592 = vmatprep.subr.mxu0 0.0
        %593 = vmatpush1.msra.mxu0 0.0
        %594 = vmatprep.subr.mxu0 0.0
        %595 = vmatpush1.msra.mxu0 0.0
        %596 = vmatprep.subr.mxu0 0.0
        %597 = vmatpush1.msra.mxu0 0.0
        %598 = vmatprep.subr.mxu0 0.0
        %599 = vmatpush1.msra.mxu0 0.0
        %600 = vmatprep.subr.mxu0 0.0
        %601 = vmatpush1.msra.mxu0 0.0
        %602 = vmatprep.subr.mxu0 0.0
        %603 = vmatpush1.msra.mxu0 0.0
        %604 = vmatprep.subr.mxu0 0.0
        %605 = vmatpush1.msra.mxu0 0.0
        %606 = vmatprep.subr.mxu0 0.0
        %607 = vmatpush1.msra.mxu0 0.0
        %608 = vmatprep.subr.mxu0 0.0
        %609 = vmatpush1.msra.mxu0 0.0
        %610 = vmatprep.subr.mxu0 0.0
        %611 = vmatpush1.msra.mxu0 0.0
        %612 = vmatprep.subr.mxu0 0.0
        %613 = vmatpush1.msra.mxu0 0.0
        %614 = vmatprep.subr.mxu0 0.0
        %615 = vmatpush1.msra.mxu0 0.0
        %616 = vmatprep.subr.mxu0 0.0
        %617 = vmatpush1.msra.mxu0 0.0
        %618 = vmatprep.subr.mxu0 0.0
        %619 = vmatpush1.msra.mxu0 %v590
        %620 = vmatprep.subr.mxu0 0.0
        %621 = vmatpush1.msra.mxu0 %v566
        %622 = vmatprep.subr.mxu0 0.0
        %623 = vmatpush1.msra.mxu0 %v561
        %624 = vmatprep.subr.mxu0 0.0
        %625 = vmatpush2.msra.mxu0 0.0
        %626 = vmatprep.subr.mxu0 0.0
        %627 = vmatpush2.msra.mxu0 0.0
        %628 = vmatprep.subr.mxu0 0.0
        %629 = vmatpush2.msra.mxu0 0.0
        %630 = vmatprep.subr.mxu0 0.0
        %631 = vmatpush2.msra.mxu0 0.0
        %632 = vmatprep.subr.mxu0 0.0
        %633 = vmatpush2.msra.mxu0 0.0
        %634 = vmatprep.subr.mxu0 0.0
        %635 = vmatpush2.msra.mxu0 0.0
        %636 = vmatprep.subr.mxu0 0.0
        %637 = vmatpush2.msra.mxu0 0.0
        %638 = vmatprep.subr.mxu0 0.0
        %639 = vmatpush2.msra.mxu0 0.0
        %640 = vmatprep.subr.mxu0 0.0
        %641 = vmatpush2.msra.mxu0 0.0
        %642 = vmatprep.subr.mxu0 0.0
        %643 = vmatpush2.msra.mxu0 0.0
        %644 = vmatprep.subr.mxu0 0.0
        %645 = vmatpush2.msra.mxu0 0.0
        %646 = vmatprep.subr.mxu0 0.0
        %647 = vmatpush2.msra.mxu0 0.0
        %648 = vmatprep.subr.mxu0 0.0
        %649 = vmatpush2.msra.mxu0 0.0
        %650 = vmatprep.subr.mxu0 0.0
        %651 = vmatpush2.msra.mxu0 0.0
        %652 = vmatprep.subr.mxu0 0.0
        %653 = vmatpush2.msra.mxu0 0.0
        %654 = vmatprep.subr.mxu0 0.0
        %655 = vmatpush2.msra.mxu0 0.0
        %656 = vmatprep.mubr.f32.mxu0 0.0
        %657 = vmatmul.mubr.f32.gmra.mxu0 %v580
        %v658 = vpop.f32.mrf.mxu0
        %v659 = vadd.f32 %v577, %v658
        %v660 = vpop.f32.mrf.mxu0
        %661 = vmatprep.mubr.f32.mxu0 0.0
        %662 = vmatmul.mubr.f32.gmra.mxu0 %v583
        %v663 = vpop.f32.mrf.mxu0
        %v664 = vadd.f32 %v577, %v663
        %v665 = vpop.f32.mrf.mxu0
        %666 = vmatprep.mubr.f32.mxu0 0.0
        %667 = vmatmul.mubr.f32.gmra.mxu0 %v586
        %v668 = vpop.f32.mrf.mxu0
        %v669 = vadd.f32 %v577, %v668
        %v670 = vpop.f32.mrf.mxu0
        %671 = vdwg.mxu0
        %v672 = vtanh.pop %v659
        %v673 = vtanh.pop %v664
        %v674 = vtanh.pop %v669
        %v675 = vmul.f32 %v672, %v365
        %v676 = vmul.f32 %v673, %v370
        %v677 = vmul.f32 %v674, %v375
        %s678 = scalar_lea.vmem %s347, 48
        %v679 = vld [vmem:[%s678] sm:$0xff]
        %v680 = vld [vmem:[%s678 + $0x8] sm:$0xff]
        %v682 = vsel %vm484, %v675, 0
        %v685 = vsel %vm484, %v676, 0
        %v688 = vsel %vm484, %v677, 0
        %690 = vmatprep.subr.mxu0 0.0
        %691 = vmatpush1.msra.mxu0 0.0
        %692 = vmatprep.subr.mxu0 0.0
        %693 = vmatpush1.msra.mxu0 0.0
        %694 = vmatprep.subr.mxu0 0.0
        %695 = vmatpush1.msra.mxu0 0.0
        %696 = vmatprep.subr.mxu0 0.0
        %697 = vmatpush1.msra.mxu0 0.0
        %698 = vmatprep.subr.mxu0 0.0
        %699 = vmatpush1.msra.mxu0 0.0
        %700 = vmatprep.subr.mxu0 0.0
        %701 = vmatpush1.msra.mxu0 0.0
        %702 = vmatprep.subr.mxu0 0.0
        %703 = vmatpush1.msra.mxu0 0.0
        %704 = vmatprep.subr.mxu0 0.0
        %705 = vmatpush1.msra.mxu0 0.0
        %706 = vmatprep.subr.mxu0 0.0
        %707 = vmatpush1.msra.mxu0 0.0
        %708 = vmatprep.subr.mxu0 0.0
        %709 = vmatpush1.msra.mxu0 0.0
        %710 = vmatprep.subr.mxu0 0.0
        %711 = vmatpush1.msra.mxu0 0.0
        %712 = vmatprep.subr.mxu0 0.0
        %713 = vmatpush1.msra.mxu0 0.0
        %714 = vmatprep.subr.mxu0 0.0
        %715 = vmatpush1.msra.mxu0 0.0
        %716 = vmatprep.subr.mxu0 0.0
        %717 = vmatpush1.msra.mxu0 0.0
        %718 = vmatprep.subr.mxu0 0.0
        %719 = vmatpush1.msra.mxu0 %v680
        %720 = vmatprep.subr.mxu0 0.0
        %721 = vmatpush1.msra.mxu0 %v679
        %722 = vmatprep.subr.mxu0 0.0
        %723 = vmatpush2.msra.mxu0 0.0
        %724 = vmatprep.subr.mxu0 0.0
        %725 = vmatpush2.msra.mxu0 0.0
        %726 = vmatprep.subr.mxu0 0.0
        %727 = vmatpush2.msra.mxu0 0.0
        %728 = vmatprep.subr.mxu0 0.0
        %729 = vmatpush2.msra.mxu0 0.0
        %730 = vmatprep.subr.mxu0 0.0
        %731 = vmatpush2.msra.mxu0 0.0
        %732 = vmatprep.subr.mxu0 0.0
        %733 = vmatpush2.msra.mxu0 0.0
        %734 = vmatprep.subr.mxu0 0.0
        %735 = vmatpush2.msra.mxu0 0.0
        %736 = vmatprep.subr.mxu0 0.0
        %737 = vmatpush2.msra.mxu0 0.0
        %738 = vmatprep.subr.mxu0 0.0
        %739 = vmatpush2.msra.mxu0 0.0
        %740 = vmatprep.subr.mxu0 0.0
        %741 = vmatpush2.msra.mxu0 0.0
        %742 = vmatprep.subr.mxu0 0.0
        %743 = vmatpush2.msra.mxu0 0.0
        %744 = vmatprep.subr.mxu0 0.0
        %745 = vmatpush2.msra.mxu0 0.0
        %746 = vmatprep.subr.mxu0 0.0
        %747 = vmatpush2.msra.mxu0 0.0
        %748 = vmatprep.subr.mxu0 0.0
        %749 = vmatpush2.msra.mxu0 0.0
        %750 = vmatprep.subr.mxu0 0.0
        %751 = vmatpush2.msra.mxu0 0.0
        %752 = vmatprep.subr.mxu0 0.0
        %753 = vmatpush2.msra.mxu0 0.0
        %754 = vmatprep.mubr.f32.mxu0 0.0
        %755 = vmatmul.mubr.f32.gmra.mxu0 %v682
        %v756 = vpop.f32.mrf.mxu0
        %v757 = vadd.f32 0.0, %v756
        %v758 = vpop.f32.mrf.mxu0
        %759 = vmatprep.mubr.f32.mxu0 0.0
        %760 = vmatmul.mubr.f32.gmra.mxu0 %v685
        %v761 = vpop.f32.mrf.mxu0
        %v762 = vadd.f32 0.0, %v761
        %v763 = vpop.f32.mrf.mxu0
        %764 = vmatprep.mubr.f32.mxu0 0.0
        %765 = vmatmul.mubr.f32.gmra.mxu0 %v688
        %v766 = vpop.f32.mrf.mxu0
        %v767 = vadd.f32 0.0, %v766
        %v768 = vpop.f32.mrf.mxu0
        %769 = vdwg.mxu0
        %v771 = vsel %vm397, %v379, 0
        %773 = vmatprep.subr.mxu0 0.0
        %774 = vmatpush1.msra.mxu0 0.0
        %775 = vmatprep.subr.mxu0 0.0
        %776 = vmatpush1.msra.mxu0 0.0
        %777 = vmatprep.subr.mxu0 0.0
        %778 = vmatpush1.msra.mxu0 0.0
        %779 = vmatprep.subr.mxu0 0.0
        %780 = vmatpush1.msra.mxu0 0.0
        %781 = vmatprep.subr.mxu0 0.0
        %782 = vmatpush1.msra.mxu0 0.0
        %783 = vmatprep.subr.mxu0 0.0
        %784 = vmatpush1.msra.mxu0 0.0
        %785 = vmatprep.subr.mxu0 0.0
        %786 = vmatpush1.msra.mxu0 0.0
        %787 = vmatprep.subr.mxu0 0.0
        %788 = vmatpush1.msra.mxu0 0.0
        %789 = vmatprep.subr.mxu0 0.0
        %790 = vmatpush1.msra.mxu0 0.0
        %791 = vmatprep.subr.mxu0 0.0
        %792 = vmatpush1.msra.mxu0 0.0
        %793 = vmatprep.subr.mxu0 0.0
        %794 = vmatpush1.msra.mxu0 0.0
        %795 = vmatprep.subr.mxu0 0.0
        %796 = vmatpush1.msra.mxu0 0.0
        %797 = vmatprep.subr.mxu0 0.0
        %798 = vmatpush1.msra.mxu0 0.0
        %799 = vmatprep.subr.mxu0 0.0
        %800 = vmatpush1.msra.mxu0 0.0
        %801 = vmatprep.subr.mxu0 0.0
        %802 = vmatpush1.msra.mxu0 0.0
        %803 = vmatprep.subr.mxu0 0.0
        %804 = vmatpush1.msra.mxu0 %v771
        %805 = vmatprep.subr.mxu0 0.0
        %806 = vmatpush2.msra.mxu0 0.0
        %807 = vmatprep.subr.mxu0 0.0
        %808 = vmatpush2.msra.mxu0 0.0
        %809 = vmatprep.subr.mxu0 0.0
        %810 = vmatpush2.msra.mxu0 0.0
        %811 = vmatprep.subr.mxu0 0.0
        %812 = vmatpush2.msra.mxu0 0.0
        %813 = vmatprep.subr.mxu0 0.0
        %814 = vmatpush2.msra.mxu0 0.0
        %815 = vmatprep.subr.mxu0 0.0
        %816 = vmatpush2.msra.mxu0 0.0
        %817 = vmatprep.subr.mxu0 0.0
        %818 = vmatpush2.msra.mxu0 0.0
        %819 = vmatprep.subr.mxu0 0.0
        %820 = vmatpush2.msra.mxu0 0.0
        %821 = vmatprep.subr.mxu0 0.0
        %822 = vmatpush2.msra.mxu0 0.0
        %823 = vmatprep.subr.mxu0 0.0
        %824 = vmatpush2.msra.mxu0 0.0
        %825 = vmatprep.subr.mxu0 0.0
        %826 = vmatpush2.msra.mxu0 0.0
        %827 = vmatprep.subr.mxu0 0.0
        %828 = vmatpush2.msra.mxu0 0.0
        %829 = vmatprep.subr.mxu0 0.0
        %830 = vmatpush2.msra.mxu0 0.0
        %831 = vmatprep.subr.mxu0 0.0
        %832 = vmatpush2.msra.mxu0 0.0
        %833 = vmatprep.subr.mxu0 0.0
        %834 = vmatpush2.msra.mxu0 0.0
        %835 = vmatprep.subr.mxu0 0.0
        %836 = vmatpush2.msra.mxu0 0.0
        %837 = vmatprep.mubr.f32.mxu0 0.0
        %838 = vmatmul.mubr.f32.gmra.mxu0 %v389
        %v839 = vpop.f32.mrf.mxu0
        %v840 = vadd.f32 %v757, %v839
        %v841 = vpop.f32.mrf.mxu0
        %842 = vmatprep.mubr.f32.mxu0 0.0
        %843 = vmatmul.mubr.f32.gmra.mxu0 %v392
        %v844 = vpop.f32.mrf.mxu0
        %v845 = vadd.f32 %v762, %v844
        %v846 = vpop.f32.mrf.mxu0
        %847 = vmatprep.mubr.f32.mxu0 0.0
        %848 = vmatmul.mubr.f32.gmra.mxu0 %v395
        %v849 = vpop.f32.mrf.mxu0
        %v850 = vadd.f32 %v767, %v849
        %v851 = vpop.f32.mrf.mxu0
        %852 = vdwg.mxu0
        %s853 = scalar_lea.vmem %s347, 80
        %v854 = vld [vmem:[%s853] sm:$0xff]
        %v855 = vld [vmem:[%s853 + $0x8] sm:$0xff]
        %856 = vmatprep.subr.mxu0 0.0
        %857 = vmatpush1.msra.mxu0 0.0
        %858 = vmatprep.subr.mxu0 0.0
        %859 = vmatpush1.msra.mxu0 0.0
        %860 = vmatprep.subr.mxu0 0.0
        %861 = vmatpush1.msra.mxu0 0.0
        %862 = vmatprep.subr.mxu0 0.0
        %863 = vmatpush1.msra.mxu0 0.0
        %864 = vmatprep.subr.mxu0 0.0
        %865 = vmatpush1.msra.mxu0 0.0
        %866 = vmatprep.subr.mxu0 0.0
        %867 = vmatpush1.msra.mxu0 0.0
        %868 = vmatprep.subr.mxu0 0.0
        %869 = vmatpush1.msra.mxu0 0.0
        %870 = vmatprep.subr.mxu0 0.0
        %871 = vmatpush1.msra.mxu0 0.0
        %872 = vmatprep.subr.mxu0 0.0
        %873 = vmatpush1.msra.mxu0 0.0
        %874 = vmatprep.subr.mxu0 0.0
        %875 = vmatpush1.msra.mxu0 0.0
        %876 = vmatprep.subr.mxu0 0.0
        %877 = vmatpush1.msra.mxu0 0.0
        %878 = vmatprep.subr.mxu0 0.0
        %879 = vmatpush1.msra.mxu0 0.0
        %880 = vmatprep.subr.mxu0 0.0
        %881 = vmatpush1.msra.mxu0 0.0
        %882 = vmatprep.subr.mxu0 0.0
        %883 = vmatpush1.msra.mxu0 0.0
        %884 = vmatprep.subr.mxu0 0.0
        %885 = vmatpush1.msra.mxu0 %v855
        %886 = vmatprep.subr.mxu0 0.0
        %887 = vmatpush1.msra.mxu0 %v854
        %888 = vmatprep.subr.mxu0 0.0
        %889 = vmatpush2.msra.mxu0 0.0
        %890 = vmatprep.subr.mxu0 0.0
        %891 = vmatpush2.msra.mxu0 0.0
        %892 = vmatprep.subr.mxu0 0.0
        %893 = vmatpush2.msra.mxu0 0.0
        %894 = vmatprep.subr.mxu0 0.0
        %895 = vmatpush2.msra.mxu0 0.0
        %896 = vmatprep.subr.mxu0 0.0
        %897 = vmatpush2.msra.mxu0 0.0
        %898 = vmatprep.subr.mxu0 0.0
        %899 = vmatpush2.msra.mxu0 0.0
        %900 = vmatprep.subr.mxu0 0.0
        %901 = vmatpush2.msra.mxu0 0.0
        %902 = vmatprep.subr.mxu0 0.0
        %903 = vmatpush2.msra.mxu0 0.0
        %904 = vmatprep.subr.mxu0 0.0
        %905 = vmatpush2.msra.mxu0 0.0
        %906 = vmatprep.subr.mxu0 0.0
        %907 = vmatpush2.msra.mxu0 0.0
        %908 = vmatprep.subr.mxu0 0.0
        %909 = vmatpush2.msra.mxu0 0.0
        %910 = vmatprep.subr.mxu0 0.0
        %911 = vmatpush2.msra.mxu0 0.0
        %912 = vmatprep.subr.mxu0 0.0
        %913 = vmatpush2.msra.mxu0 0.0
        %914 = vmatprep.subr.mxu0 0.0
        %915 = vmatpush2.msra.mxu0 0.0
        %916 = vmatprep.subr.mxu0 0.0
        %917 = vmatpush2.msra.mxu0 0.0
        %918 = vmatprep.subr.mxu0 0.0
        %919 = vmatpush2.msra.mxu0 0.0
        %920 = vmatprep.mubr.f32.mxu0 0.0
        %921 = vmatmul.mubr.f32.gmra.mxu0 %v682
        %v922 = vpop.f32.mrf.mxu0
        %v923 = vadd.f32 0.0, %v922
        %v924 = vpop.f32.mrf.mxu0
        %925 = vmatprep.mubr.f32.mxu0 0.0
        %926 = vmatmul.mubr.f32.gmra.mxu0 %v685
        %v927 = vpop.f32.mrf.mxu0
        %v928 = vadd.f32 0.0, %v927
        %v929 = vpop.f32.mrf.mxu0
        %930 = vmatprep.mubr.f32.mxu0 0.0
        %931 = vmatmul.mubr.f32.gmra.mxu0 %v688
        %v932 = vpop.f32.mrf.mxu0
        %v933 = vadd.f32 0.0, %v932
        %v934 = vpop.f32.mrf.mxu0
        %935 = vdwg.mxu0
        %v937 = vsel %vm397, %v381, 0
        %939 = vmatprep.subr.mxu0 0.0
        %940 = vmatpush1.msra.mxu0 0.0
        %941 = vmatprep.subr.mxu0 0.0
        %942 = vmatpush1.msra.mxu0 0.0
        %943 = vmatprep.subr.mxu0 0.0
        %944 = vmatpush1.msra.mxu0 0.0
        %945 = vmatprep.subr.mxu0 0.0
        %946 = vmatpush1.msra.mxu0 0.0
        %947 = vmatprep.subr.mxu0 0.0
        %948 = vmatpush1.msra.mxu0 0.0
        %949 = vmatprep.subr.mxu0 0.0
        %950 = vmatpush1.msra.mxu0 0.0
        %951 = vmatprep.subr.mxu0 0.0
        %952 = vmatpush1.msra.mxu0 0.0
        %953 = vmatprep.subr.mxu0 0.0
        %954 = vmatpush1.msra.mxu0 0.0
        %955 = vmatprep.subr.mxu0 0.0
        %956 = vmatpush1.msra.mxu0 0.0
        %957 = vmatprep.subr.mxu0 0.0
        %958 = vmatpush1.msra.mxu0 0.0
        %959 = vmatprep.subr.mxu0 0.0
        %960 = vmatpush1.msra.mxu0 0.0
        %961 = vmatprep.subr.mxu0 0.0
        %962 = vmatpush1.msra.mxu0 0.0
        %963 = vmatprep.subr.mxu0 0.0
        %964 = vmatpush1.msra.mxu0 0.0
        %965 = vmatprep.subr.mxu0 0.0
        %966 = vmatpush1.msra.mxu0 0.0
        %967 = vmatprep.subr.mxu0 0.0
        %968 = vmatpush1.msra.mxu0 0.0
        %969 = vmatprep.subr.mxu0 0.0
        %970 = vmatpush1.msra.mxu0 %v937
        %971 = vmatprep.subr.mxu0 0.0
        %972 = vmatpush2.msra.mxu0 0.0
        %973 = vmatprep.subr.mxu0 0.0
        %974 = vmatpush2.msra.mxu0 0.0
        %975 = vmatprep.subr.mxu0 0.0
        %976 = vmatpush2.msra.mxu0 0.0
        %977 = vmatprep.subr.mxu0 0.0
        %978 = vmatpush2.msra.mxu0 0.0
        %979 = vmatprep.subr.mxu0 0.0
        %980 = vmatpush2.msra.mxu0 0.0
        %981 = vmatprep.subr.mxu0 0.0
        %982 = vmatpush2.msra.mxu0 0.0
        %983 = vmatprep.subr.mxu0 0.0
        %984 = vmatpush2.msra.mxu0 0.0
        %985 = vmatprep.subr.mxu0 0.0
        %986 = vmatpush2.msra.mxu0 0.0
        %987 = vmatprep.subr.mxu0 0.0
        %988 = vmatpush2.msra.mxu0 0.0
        %989 = vmatprep.subr.mxu0 0.0
        %990 = vmatpush2.msra.mxu0 0.0
        %991 = vmatprep.subr.mxu0 0.0
        %992 = vmatpush2.msra.mxu0 0.0
        %993 = vmatprep.subr.mxu0 0.0
        %994 = vmatpush2.msra.mxu0 0.0
        %995 = vmatprep.subr.mxu0 0.0
        %996 = vmatpush2.msra.mxu0 0.0
        %997 = vmatprep.subr.mxu0 0.0
        %998 = vmatpush2.msra.mxu0 0.0
        %999 = vmatprep.subr.mxu0 0.0
        %1000 = vmatpush2.msra.mxu0 0.0
        %1001 = vmatprep.subr.mxu0 0.0
        %1002 = vmatpush2.msra.mxu0 0.0
        %1003 = vmatprep.mubr.f32.mxu0 0.0
        %1004 = vmatmul.mubr.f32.gmra.mxu0 %v389
        %v1005 = vpop.f32.mrf.mxu0
        %v1006 = vadd.f32 %v923, %v1005
        %v1007 = vpop.f32.mrf.mxu0
        %1008 = vmatprep.mubr.f32.mxu0 0.0
        %1009 = vmatmul.mubr.f32.gmra.mxu0 %v392
        %v1010 = vpop.f32.mrf.mxu0
        %v1011 = vadd.f32 %v928, %v1010
        %v1012 = vpop.f32.mrf.mxu0
        %1013 = vmatprep.mubr.f32.mxu0 0.0
        %1014 = vmatmul.mubr.f32.gmra.mxu0 %v395
        %v1015 = vpop.f32.mrf.mxu0
        %v1016 = vadd.f32 %v933, %v1015
        %v1017 = vpop.f32.mrf.mxu0
        %1018 = vdwg.mxu0
        %v1019 = vld [vmem:[%s347] sm:$0xff]
        %v1020 = vld [vmem:[%s347 + $0x8] sm:$0xff]
        %v1021 = vlaneseq
        %v1022 = vshrl.u32 %v1021, 7
        %v1023 = vsub.s32 1, %v1022
        %v1024 = vrot.slane %v377, %v1023
        %1025 = vmatprep.subr.mxu0 0.0
        %1026 = vmatpush1.msra.mxu0 0.0
        %1027 = vmatprep.subr.mxu0 0.0
        %1028 = vmatpush1.msra.mxu0 0.0
        %1029 = vmatprep.subr.mxu0 0.0
        %1030 = vmatpush1.msra.mxu0 0.0
        %1031 = vmatprep.subr.mxu0 0.0
        %1032 = vmatpush1.msra.mxu0 0.0
        %1033 = vmatprep.subr.mxu0 0.0
        %1034 = vmatpush1.msra.mxu0 0.0
        %1035 = vmatprep.subr.mxu0 0.0
        %1036 = vmatpush1.msra.mxu0 0.0
        %1037 = vmatprep.subr.mxu0 0.0
        %1038 = vmatpush1.msra.mxu0 0.0
        %1039 = vmatprep.subr.mxu0 0.0
        %1040 = vmatpush1.msra.mxu0 0.0
        %1041 = vmatprep.subr.mxu0 0.0
        %1042 = vmatpush1.msra.mxu0 0.0
        %1043 = vmatprep.subr.mxu0 0.0
        %1044 = vmatpush1.msra.mxu0 0.0
        %1045 = vmatprep.subr.mxu0 0.0
        %1046 = vmatpush1.msra.mxu0 0.0
        %1047 = vmatprep.subr.mxu0 0.0
        %1048 = vmatpush1.msra.mxu0 0.0
        %1049 = vmatprep.subr.mxu0 0.0
        %1050 = vmatpush1.msra.mxu0 0.0
        %1051 = vmatprep.subr.mxu0 0.0
        %1052 = vmatpush1.msra.mxu0 0.0
        %1053 = vmatprep.subr.mxu0 0.0
        %1054 = vmatpush1.msra.mxu0 %v1020
        %1055 = vmatprep.subr.mxu0 0.0
        %1056 = vmatpush1.msra.mxu0 %v1019
        %1057 = vmatprep.subr.mxu0 0.0
        %1058 = vmatpush2.msra.mxu0 0.0
        %1059 = vmatprep.subr.mxu0 0.0
        %1060 = vmatpush2.msra.mxu0 0.0
        %1061 = vmatprep.subr.mxu0 0.0
        %1062 = vmatpush2.msra.mxu0 0.0
        %1063 = vmatprep.subr.mxu0 0.0
        %1064 = vmatpush2.msra.mxu0 0.0
        %1065 = vmatprep.subr.mxu0 0.0
        %1066 = vmatpush2.msra.mxu0 0.0
        %1067 = vmatprep.subr.mxu0 0.0
        %1068 = vmatpush2.msra.mxu0 0.0
        %1069 = vmatprep.subr.mxu0 0.0
        %1070 = vmatpush2.msra.mxu0 0.0
        %1071 = vmatprep.subr.mxu0 0.0
        %1072 = vmatpush2.msra.mxu0 0.0
        %1073 = vmatprep.subr.mxu0 0.0
        %1074 = vmatpush2.msra.mxu0 0.0
        %1075 = vmatprep.subr.mxu0 0.0
        %1076 = vmatpush2.msra.mxu0 0.0
        %1077 = vmatprep.subr.mxu0 0.0
        %1078 = vmatpush2.msra.mxu0 0.0
        %1079 = vmatprep.subr.mxu0 0.0
        %1080 = vmatpush2.msra.mxu0 0.0
        %1081 = vmatprep.subr.mxu0 0.0
        %1082 = vmatpush2.msra.mxu0 0.0
        %1083 = vmatprep.subr.mxu0 0.0
        %1084 = vmatpush2.msra.mxu0 0.0
        %1085 = vmatprep.subr.mxu0 0.0
        %1086 = vmatpush2.msra.mxu0 0.0
        %1087 = vmatprep.subr.mxu0 0.0
        %1088 = vmatpush2.msra.mxu0 0.0
        %1089 = vmatprep.mubr.f32.mxu0 0.0
        %1090 = vmatmul.mubr.f32.gmra.mxu0 %v682
        %v1091 = vpop.f32.mrf.mxu0
        %v1092 = vadd.f32 %v1024, %v1091
        %v1093 = vpop.f32.mrf.mxu0
        %1094 = vmatprep.mubr.f32.mxu0 0.0
        %1095 = vmatmul.mubr.f32.gmra.mxu0 %v685
        %v1096 = vpop.f32.mrf.mxu0
        %v1097 = vadd.f32 %v1024, %v1096
        %v1098 = vpop.f32.mrf.mxu0
        %1099 = vmatprep.mubr.f32.mxu0 0.0
        %1100 = vmatmul.mubr.f32.gmra.mxu0 %v688
        %v1101 = vpop.f32.mrf.mxu0
        %v1102 = vadd.f32 %v1024, %v1101
        %v1103 = vpop.f32.mrf.mxu0
        %1104 = vdwg.mxu0
        %s1105 = scalar_lea.vmem %s347, 32
        %v1106 = vld [vmem:[%s1105] sm:$0xff]
        %v1107 = vld [vmem:[%s1105 + $0x8] sm:$0xff]
        %v1109 = vsel %vm484, %v1092, 0
        %v1112 = vsel %vm484, %v1097, 0
        %v1115 = vsel %vm484, %v1102, 0
        %1117 = vmatprep.subr.mxu0 0.0
        %1118 = vmatpush1.msra.mxu0 0.0
        %1119 = vmatprep.subr.mxu0 0.0
        %1120 = vmatpush1.msra.mxu0 0.0
        %1121 = vmatprep.subr.mxu0 0.0
        %1122 = vmatpush1.msra.mxu0 0.0
        %1123 = vmatprep.subr.mxu0 0.0
        %1124 = vmatpush1.msra.mxu0 0.0
        %1125 = vmatprep.subr.mxu0 0.0
        %1126 = vmatpush1.msra.mxu0 0.0
        %1127 = vmatprep.subr.mxu0 0.0
        %1128 = vmatpush1.msra.mxu0 0.0
        %1129 = vmatprep.subr.mxu0 0.0
        %1130 = vmatpush1.msra.mxu0 0.0
        %1131 = vmatprep.subr.mxu0 0.0
        %1132 = vmatpush1.msra.mxu0 0.0
        %1133 = vmatprep.subr.mxu0 0.0
        %1134 = vmatpush1.msra.mxu0 0.0
        %1135 = vmatprep.subr.mxu0 0.0
        %1136 = vmatpush1.msra.mxu0 0.0
        %1137 = vmatprep.subr.mxu0 0.0
        %1138 = vmatpush1.msra.mxu0 0.0
        %1139 = vmatprep.subr.mxu0 0.0
        %1140 = vmatpush1.msra.mxu0 0.0
        %1141 = vmatprep.subr.mxu0 0.0
        %1142 = vmatpush1.msra.mxu0 0.0
        %1143 = vmatprep.subr.mxu0 0.0
        %1144 = vmatpush1.msra.mxu0 0.0
        %1145 = vmatprep.subr.mxu0 0.0
        %1146 = vmatpush1.msra.mxu0 %v1107
        %1147 = vmatprep.subr.mxu0 0.0
        %1148 = vmatpush1.msra.mxu0 %v1106
        %1149 = vmatprep.subr.mxu0 0.0
        %1150 = vmatpush2.msra.mxu0 0.0
        %1151 = vmatprep.subr.mxu0 0.0
        %1152 = vmatpush2.msra.mxu0 0.0
        %1153 = vmatprep.subr.mxu0 0.0
        %1154 = vmatpush2.msra.mxu0 0.0
        %1155 = vmatprep.subr.mxu0 0.0
        %1156 = vmatpush2.msra.mxu0 0.0
        %1157 = vmatprep.subr.mxu0 0.0
        %1158 = vmatpush2.msra.mxu0 0.0
        %1159 = vmatprep.subr.mxu0 0.0
        %1160 = vmatpush2.msra.mxu0 0.0
        %1161 = vmatprep.subr.mxu0 0.0
        %1162 = vmatpush2.msra.mxu0 0.0
        %1163 = vmatprep.subr.mxu0 0.0
        %1164 = vmatpush2.msra.mxu0 0.0
        %1165 = vmatprep.subr.mxu0 0.0
        %1166 = vmatpush2.msra.mxu0 0.0
        %1167 = vmatprep.subr.mxu0 0.0
        %1168 = vmatpush2.msra.mxu0 0.0
        %1169 = vmatprep.subr.mxu0 0.0
        %1170 = vmatpush2.msra.mxu0 0.0
        %1171 = vmatprep.subr.mxu0 0.0
        %1172 = vmatpush2.msra.mxu0 0.0
        %1173 = vmatprep.subr.mxu0 0.0
        %1174 = vmatpush2.msra.mxu0 0.0
        %1175 = vmatprep.subr.mxu0 0.0
        %1176 = vmatpush2.msra.mxu0 0.0
        %1177 = vmatprep.subr.mxu0 0.0
        %1178 = vmatpush2.msra.mxu0 0.0
        %1179 = vmatprep.subr.mxu0 0.0
        %1180 = vmatpush2.msra.mxu0 0.0
        %1181 = vmatprep.mubr.f32.mxu0 0.0
        %1182 = vmatmul.mubr.f32.gmra.mxu0 %v1109
        %v1183 = vpop.f32.mrf.mxu0
        %v1184 = vadd.f32 0.0, %v1183
        %v1185 = vpop.f32.mrf.mxu0
        %1186 = vmatprep.mubr.f32.mxu0 0.0
        %1187 = vmatmul.mubr.f32.gmra.mxu0 %v1112
        %v1188 = vpop.f32.mrf.mxu0
        %v1189 = vadd.f32 0.0, %v1188
        %v1190 = vpop.f32.mrf.mxu0
        %1191 = vmatprep.mubr.f32.mxu0 0.0
        %1192 = vmatmul.mubr.f32.gmra.mxu0 %v1115
        %v1193 = vpop.f32.mrf.mxu0
        %v1194 = vadd.f32 0.0, %v1193
        %v1195 = vpop.f32.mrf.mxu0
        %1196 = vdwg.mxu0
        %v1197 = vlaneseq
        %v1198 = vshrl.u32 %v1197, 7
        %v1199 = vsub.s32 3, %v1198
        %v1200 = vrot.slane %v377, %v1199
        %v1202 = vsel %vm588, %v1194, 0
        %1204 = vmatprep.subr.mxu0 0.0
        %1205 = vmatpush1.msra.mxu0 0.0
        %1206 = vmatprep.subr.mxu0 0.0
        %1207 = vmatpush1.msra.mxu0 0.0
        %1208 = vmatprep.subr.mxu0 0.0
        %1209 = vmatpush1.msra.mxu0 0.0
        %1210 = vmatprep.subr.mxu0 0.0
        %1211 = vmatpush1.msra.mxu0 0.0
        %1212 = vmatprep.subr.mxu0 0.0
        %1213 = vmatpush1.msra.mxu0 0.0
        %1214 = vmatprep.subr.mxu0 0.0
        %1215 = vmatpush1.msra.mxu0 0.0
        %1216 = vmatprep.subr.mxu0 0.0
        %1217 = vmatpush1.msra.mxu0 0.0
        %1218 = vmatprep.subr.mxu0 0.0
        %1219 = vmatpush1.msra.mxu0 0.0
        %1220 = vmatprep.subr.mxu0 0.0
        %1221 = vmatpush1.msra.mxu0 0.0
        %1222 = vmatprep.subr.mxu0 0.0
        %1223 = vmatpush1.msra.mxu0 0.0
        %1224 = vmatprep.subr.mxu0 0.0
        %1225 = vmatpush1.msra.mxu0 0.0
        %1226 = vmatprep.subr.mxu0 0.0
        %1227 = vmatpush1.msra.mxu0 0.0
        %1228 = vmatprep.subr.mxu0 0.0
        %1229 = vmatpush1.msra.mxu0 0.0
        %1230 = vmatprep.subr.mxu0 0.0
        %1231 = vmatpush1.msra.mxu0 %v1202
        %1232 = vmatprep.subr.mxu0 0.0
        %1233 = vmatpush1.msra.mxu0 %v1189
        %1234 = vmatprep.subr.mxu0 0.0
        %1235 = vmatpush1.msra.mxu0 %v1184
        %1236 = vmatprep.subr.mxu0 0.0
        %1237 = vmatpush2.msra.mxu0 0.0
        %1238 = vmatprep.subr.mxu0 0.0
        %1239 = vmatpush2.msra.mxu0 0.0
        %1240 = vmatprep.subr.mxu0 0.0
        %1241 = vmatpush2.msra.mxu0 0.0
        %1242 = vmatprep.subr.mxu0 0.0
        %1243 = vmatpush2.msra.mxu0 0.0
        %1244 = vmatprep.subr.mxu0 0.0
        %1245 = vmatpush2.msra.mxu0 0.0
        %1246 = vmatprep.subr.mxu0 0.0
        %1247 = vmatpush2.msra.mxu0 0.0
        %1248 = vmatprep.subr.mxu0 0.0
        %1249 = vmatpush2.msra.mxu0 0.0
        %1250 = vmatprep.subr.mxu0 0.0
        %1251 = vmatpush2.msra.mxu0 0.0
        %1252 = vmatprep.subr.mxu0 0.0
        %1253 = vmatpush2.msra.mxu0 0.0
        %1254 = vmatprep.subr.mxu0 0.0
        %1255 = vmatpush2.msra.mxu0 0.0
        %1256 = vmatprep.subr.mxu0 0.0
        %1257 = vmatpush2.msra.mxu0 0.0
        %1258 = vmatprep.subr.mxu0 0.0
        %1259 = vmatpush2.msra.mxu0 0.0
        %1260 = vmatprep.subr.mxu0 0.0
        %1261 = vmatpush2.msra.mxu0 0.0
        %1262 = vmatprep.subr.mxu0 0.0
        %1263 = vmatpush2.msra.mxu0 0.0
        %1264 = vmatprep.subr.mxu0 0.0
        %1265 = vmatpush2.msra.mxu0 0.0
        %1266 = vmatprep.subr.mxu0 0.0
        %1267 = vmatpush2.msra.mxu0 0.0
        %1268 = vmatprep.mubr.f32.mxu0 0.0
        %1269 = vmatmul.mubr.f32.gmra.mxu0 %v580
        %v1270 = vpop.f32.mrf.mxu0
        %v1271 = vadd.f32 %v1200, %v1270
        %v1272 = vpop.f32.mrf.mxu0
        %1273 = vmatprep.mubr.f32.mxu0 0.0
        %1274 = vmatmul.mubr.f32.gmra.mxu0 %v583
        %v1275 = vpop.f32.mrf.mxu0
        %v1276 = vadd.f32 %v1200, %v1275
        %v1277 = vpop.f32.mrf.mxu0
        %1278 = vmatprep.mubr.f32.mxu0 0.0
        %1279 = vmatmul.mubr.f32.gmra.mxu0 %v586
        %v1280 = vpop.f32.mrf.mxu0
        %v1281 = vadd.f32 %v1200, %v1280
        %v1282 = vpop.f32.mrf.mxu0
        %1283 = vdwg.mxu0
        %v1284 = vtanh.pop %v1271
        %v1285 = vtanh.pop %v1276
        %v1286 = vtanh.pop %v1281
        %v1287 = vmul.f32 %v1284, %v365
        %v1288 = vmul.f32 %v1285, %v370
        %v1289 = vmul.f32 %v1286, %v375
        %s1290 = scalar_lea.vmem %s347, 64
        %v1291 = vld [vmem:[%s1290] sm:$0xff]
        %v1292 = vld [vmem:[%s1290 + $0x8] sm:$0xff]
        %v1294 = vsel %vm484, %v1287, 0
        %v1297 = vsel %vm484, %v1288, 0
        %v1300 = vsel %vm484, %v1289, 0
        %1302 = vmatprep.subr.mxu0 0.0
        %1303 = vmatpush1.msra.mxu0 0.0
        %1304 = vmatprep.subr.mxu0 0.0
        %1305 = vmatpush1.msra.mxu0 0.0
        %1306 = vmatprep.subr.mxu0 0.0
        %1307 = vmatpush1.msra.mxu0 0.0
        %1308 = vmatprep.subr.mxu0 0.0
        %1309 = vmatpush1.msra.mxu0 0.0
        %1310 = vmatprep.subr.mxu0 0.0
        %1311 = vmatpush1.msra.mxu0 0.0
        %1312 = vmatprep.subr.mxu0 0.0
        %1313 = vmatpush1.msra.mxu0 0.0
        %1314 = vmatprep.subr.mxu0 0.0
        %1315 = vmatpush1.msra.mxu0 0.0
        %1316 = vmatprep.subr.mxu0 0.0
        %1317 = vmatpush1.msra.mxu0 0.0
        %1318 = vmatprep.subr.mxu0 0.0
        %1319 = vmatpush1.msra.mxu0 0.0
        %1320 = vmatprep.subr.mxu0 0.0
        %1321 = vmatpush1.msra.mxu0 0.0
        %1322 = vmatprep.subr.mxu0 0.0
        %1323 = vmatpush1.msra.mxu0 0.0
        %1324 = vmatprep.subr.mxu0 0.0
        %1325 = vmatpush1.msra.mxu0 0.0
        %1326 = vmatprep.subr.mxu0 0.0
        %1327 = vmatpush1.msra.mxu0 0.0
        %1328 = vmatprep.subr.mxu0 0.0
        %1329 = vmatpush1.msra.mxu0 0.0
        %1330 = vmatprep.subr.mxu0 0.0
        %1331 = vmatpush1.msra.mxu0 %v1292
        %1332 = vmatprep.subr.mxu0 0.0
        %1333 = vmatpush1.msra.mxu0 %v1291
        %1334 = vmatprep.subr.mxu0 0.0
        %1335 = vmatpush2.msra.mxu0 0.0
        %1336 = vmatprep.subr.mxu0 0.0
        %1337 = vmatpush2.msra.mxu0 0.0
        %1338 = vmatprep.subr.mxu0 0.0
        %1339 = vmatpush2.msra.mxu0 0.0
        %1340 = vmatprep.subr.mxu0 0.0
        %1341 = vmatpush2.msra.mxu0 0.0
        %1342 = vmatprep.subr.mxu0 0.0
        %1343 = vmatpush2.msra.mxu0 0.0
        %1344 = vmatprep.subr.mxu0 0.0
        %1345 = vmatpush2.msra.mxu0 0.0
        %1346 = vmatprep.subr.mxu0 0.0
        %1347 = vmatpush2.msra.mxu0 0.0
        %1348 = vmatprep.subr.mxu0 0.0
        %1349 = vmatpush2.msra.mxu0 0.0
        %1350 = vmatprep.subr.mxu0 0.0
        %1351 = vmatpush2.msra.mxu0 0.0
        %1352 = vmatprep.subr.mxu0 0.0
        %1353 = vmatpush2.msra.mxu0 0.0
        %1354 = vmatprep.subr.mxu0 0.0
        %1355 = vmatpush2.msra.mxu0 0.0
        %1356 = vmatprep.subr.mxu0 0.0
        %1357 = vmatpush2.msra.mxu0 0.0
        %1358 = vmatprep.subr.mxu0 0.0
        %1359 = vmatpush2.msra.mxu0 0.0
        %1360 = vmatprep.subr.mxu0 0.0
        %1361 = vmatpush2.msra.mxu0 0.0
        %1362 = vmatprep.subr.mxu0 0.0
        %1363 = vmatpush2.msra.mxu0 0.0
        %1364 = vmatprep.subr.mxu0 0.0
        %1365 = vmatpush2.msra.mxu0 0.0
        %1366 = vmatprep.mubr.f32.mxu0 0.0
        %1367 = vmatmul.mubr.f32.gmra.mxu0 %v1294
        %v1368 = vpop.f32.mrf.mxu0
        %v1369 = vadd.f32 0.0, %v1368
        %v1370 = vpop.f32.mrf.mxu0
        %1371 = vmatprep.mubr.f32.mxu0 0.0
        %1372 = vmatmul.mubr.f32.gmra.mxu0 %v1297
        %v1373 = vpop.f32.mrf.mxu0
        %v1374 = vadd.f32 0.0, %v1373
        %v1375 = vpop.f32.mrf.mxu0
        %1376 = vmatprep.mubr.f32.mxu0 0.0
        %1377 = vmatmul.mubr.f32.gmra.mxu0 %v1300
        %v1378 = vpop.f32.mrf.mxu0
        %v1379 = vadd.f32 0.0, %v1378
        %v1380 = vpop.f32.mrf.mxu0
        %1381 = vdwg.mxu0
        %v1382 = vadd.f32 %v840, %v1369
        %v1383 = vadd.f32 %v845, %v1374
        %v1384 = vadd.f32 %v850, %v1379
        %s1385 = scalar_lea.vmem %s347, 96
        %v1386 = vld [vmem:[%s1385] sm:$0xff]
        %v1387 = vld [vmem:[%s1385 + $0x8] sm:$0xff]
        %1388 = vmatprep.subr.mxu0 0.0
        %1389 = vmatpush1.msra.mxu0 0.0
        %1390 = vmatprep.subr.mxu0 0.0
        %1391 = vmatpush1.msra.mxu0 0.0
        %1392 = vmatprep.subr.mxu0 0.0
        %1393 = vmatpush1.msra.mxu0 0.0
        %1394 = vmatprep.subr.mxu0 0.0
        %1395 = vmatpush1.msra.mxu0 0.0
        %1396 = vmatprep.subr.mxu0 0.0
        %1397 = vmatpush1.msra.mxu0 0.0
        %1398 = vmatprep.subr.mxu0 0.0
        %1399 = vmatpush1.msra.mxu0 0.0
        %1400 = vmatprep.subr.mxu0 0.0
        %1401 = vmatpush1.msra.mxu0 0.0
        %1402 = vmatprep.subr.mxu0 0.0
        %1403 = vmatpush1.msra.mxu0 0.0
        %1404 = vmatprep.subr.mxu0 0.0
        %1405 = vmatpush1.msra.mxu0 0.0
        %1406 = vmatprep.subr.mxu0 0.0
        %1407 = vmatpush1.msra.mxu0 0.0
        %1408 = vmatprep.subr.mxu0 0.0
        %1409 = vmatpush1.msra.mxu0 0.0
        %1410 = vmatprep.subr.mxu0 0.0
        %1411 = vmatpush1.msra.mxu0 0.0
        %1412 = vmatprep.subr.mxu0 0.0
        %1413 = vmatpush1.msra.mxu0 0.0
        %1414 = vmatprep.subr.mxu0 0.0
        %1415 = vmatpush1.msra.mxu0 0.0
        %1416 = vmatprep.subr.mxu0 0.0
        %1417 = vmatpush1.msra.mxu0 %v1387
        %1418 = vmatprep.subr.mxu0 0.0
        %1419 = vmatpush1.msra.mxu0 %v1386
        %1420 = vmatprep.subr.mxu0 0.0
        %1421 = vmatpush2.msra.mxu0 0.0
        %1422 = vmatprep.subr.mxu0 0.0
        %1423 = vmatpush2.msra.mxu0 0.0
        %1424 = vmatprep.subr.mxu0 0.0
        %1425 = vmatpush2.msra.mxu0 0.0
        %1426 = vmatprep.subr.mxu0 0.0
        %1427 = vmatpush2.msra.mxu0 0.0
        %1428 = vmatprep.subr.mxu0 0.0
        %1429 = vmatpush2.msra.mxu0 0.0
        %1430 = vmatprep.subr.mxu0 0.0
        %1431 = vmatpush2.msra.mxu0 0.0
        %1432 = vmatprep.subr.mxu0 0.0
        %1433 = vmatpush2.msra.mxu0 0.0
        %1434 = vmatprep.subr.mxu0 0.0
        %1435 = vmatpush2.msra.mxu0 0.0
        %1436 = vmatprep.subr.mxu0 0.0
        %1437 = vmatpush2.msra.mxu0 0.0
        %1438 = vmatprep.subr.mxu0 0.0
        %1439 = vmatpush2.msra.mxu0 0.0
        %1440 = vmatprep.subr.mxu0 0.0
        %1441 = vmatpush2.msra.mxu0 0.0
        %1442 = vmatprep.subr.mxu0 0.0
        %1443 = vmatpush2.msra.mxu0 0.0
        %1444 = vmatprep.subr.mxu0 0.0
        %1445 = vmatpush2.msra.mxu0 0.0
        %1446 = vmatprep.subr.mxu0 0.0
        %1447 = vmatpush2.msra.mxu0 0.0
        %1448 = vmatprep.subr.mxu0 0.0
        %1449 = vmatpush2.msra.mxu0 0.0
        %1450 = vmatprep.subr.mxu0 0.0
        %1451 = vmatpush2.msra.mxu0 0.0
        %1452 = vmatprep.mubr.f32.mxu0 0.0
        %1453 = vmatmul.mubr.f32.gmra.mxu0 %v1294
        %v1454 = vpop.f32.mrf.mxu0
        %v1455 = vadd.f32 0.0, %v1454
        %v1456 = vpop.f32.mrf.mxu0
        %1457 = vmatprep.mubr.f32.mxu0 0.0
        %1458 = vmatmul.mubr.f32.gmra.mxu0 %v1297
        %v1459 = vpop.f32.mrf.mxu0
        %v1460 = vadd.f32 0.0, %v1459
        %v1461 = vpop.f32.mrf.mxu0
        %1462 = vmatprep.mubr.f32.mxu0 0.0
        %1463 = vmatmul.mubr.f32.gmra.mxu0 %v1300
        %v1464 = vpop.f32.mrf.mxu0
        %v1465 = vadd.f32 0.0, %v1464
        %v1466 = vpop.f32.mrf.mxu0
        %1467 = vdwg.mxu0
        %v1468 = vadd.f32 %v1006, %v1455
        %v1469 = vadd.f32 %v1011, %v1460
        %v1470 = vadd.f32 %v1016, %v1465
        %v1471 = vlaneseq
        %v1472 = vshrl.u32 %v1471, 7
        %v1473 = vsub.s32 4, %v1472
        %v1474 = vrot.slane %v377, %v1473
        %v1475 = vadd.f32 %v1382, %v1474
        %v1476 = vadd.f32 %v1383, %v1474
        %v1477 = vadd.f32 %v1384, %v1474
        %v1478 = vxor.u32 %v1475, 2147483648
        %v1479 = vxor.u32 %v1476, 2147483648
        %v1480 = vxor.u32 %v1477, 2147483648
        %v1481 = vmul.f32 %v1478, 1.442695
        %v1482 = vpow.pop %v1481
        %v1483 = vmul.f32 %v1479, 1.442695
        %v1484 = vpow.pop %v1483
        %v1485 = vmul.f32 %v1480, 1.442695
        %v1486 = vpow.pop %v1485
        %v1487 = vadd.f32 %v1482, 1.0
        %v1488 = vadd.f32 %v1484, 1.0
        %v1489 = vadd.f32 %v1486, 1.0
        %v1490 = vrcp.pop %v1487
        %v1491 = vmul.f32 1.0, %v1490
        %v1492 = vrcp.pop %v1488
        %v1493 = vmul.f32 1.0, %v1492
        %v1494 = vrcp.pop %v1489
        %v1495 = vmul.f32 1.0, %v1494
        %v1496 = vlaneseq
        %v1497 = vshrl.u32 %v1496, 7
        %v1498 = vsub.s32 5, %v1497
        %v1499 = vrot.slane %v377, %v1498
        %v1500 = vadd.f32 %v1468, %v1499
        %v1501 = vadd.f32 %v1469, %v1499
        %v1502 = vadd.f32 %v1470, %v1499
        %v1503 = vtanh.pop %v1500
        %v1504 = vtanh.pop %v1501
        %v1505 = vtanh.pop %v1502
        %v1506 = vmul.f32 %v1491, %v1503
        %v1507 = vmul.f32 %v1493, %v1504
        %v1508 = vmul.f32 %v1495, %v1505
        %v1510 = vsel %vm578, %v358, 0
        %v1513 = vsel %vm588, %v1508, 0
        %1515 = vmatprep.subr.mxu0 0.0
        %1516 = vmatpush1.msra.mxu0 0.0
        %1517 = vmatprep.subr.mxu0 0.0
        %1518 = vmatpush1.msra.mxu0 0.0
        %1519 = vmatprep.subr.mxu0 0.0
        %1520 = vmatpush1.msra.mxu0 0.0
        %1521 = vmatprep.subr.mxu0 0.0
        %1522 = vmatpush1.msra.mxu0 0.0
        %1523 = vmatprep.subr.mxu0 0.0
        %1524 = vmatpush1.msra.mxu0 0.0
        %1525 = vmatprep.subr.mxu0 0.0
        %1526 = vmatpush1.msra.mxu0 0.0
        %1527 = vmatprep.subr.mxu0 0.0
        %1528 = vmatpush1.msra.mxu0 0.0
        %1529 = vmatprep.subr.mxu0 0.0
        %1530 = vmatpush1.msra.mxu0 0.0
        %1531 = vmatprep.subr.mxu0 0.0
        %1532 = vmatpush1.msra.mxu0 0.0
        %1533 = vmatprep.subr.mxu0 0.0
        %1534 = vmatpush1.msra.mxu0 0.0
        %1535 = vmatprep.subr.mxu0 0.0
        %1536 = vmatpush1.msra.mxu0 0.0
        %1537 = vmatprep.subr.mxu0 0.0
        %1538 = vmatpush1.msra.mxu0 0.0
        %1539 = vmatprep.subr.mxu0 0.0
        %1540 = vmatpush1.msra.mxu0 0.0
        %1541 = vmatprep.subr.mxu0 0.0
        %1542 = vmatpush1.msra.mxu0 %v1513
        %1543 = vmatprep.subr.mxu0 0.0
        %1544 = vmatpush1.msra.mxu0 %v1507
        %1545 = vmatprep.subr.mxu0 0.0
        %1546 = vmatpush1.msra.mxu0 %v1506
        %1547 = vmatprep.subr.mxu0 0.0
        %1548 = vmatpush2.msra.mxu0 0.0
        %1549 = vmatprep.subr.mxu0 0.0
        %1550 = vmatpush2.msra.mxu0 0.0
        %1551 = vmatprep.subr.mxu0 0.0
        %1552 = vmatpush2.msra.mxu0 0.0
        %1553 = vmatprep.subr.mxu0 0.0
        %1554 = vmatpush2.msra.mxu0 0.0
        %1555 = vmatprep.subr.mxu0 0.0
        %1556 = vmatpush2.msra.mxu0 0.0
        %1557 = vmatprep.subr.mxu0 0.0
        %1558 = vmatpush2.msra.mxu0 0.0
        %1559 = vmatprep.subr.mxu0 0.0
        %1560 = vmatpush2.msra.mxu0 0.0
        %1561 = vmatprep.subr.mxu0 0.0
        %1562 = vmatpush2.msra.mxu0 0.0
        %1563 = vmatprep.subr.mxu0 0.0
        %1564 = vmatpush2.msra.mxu0 0.0
        %1565 = vmatprep.subr.mxu0 0.0
        %1566 = vmatpush2.msra.mxu0 0.0
        %1567 = vmatprep.subr.mxu0 0.0
        %1568 = vmatpush2.msra.mxu0 0.0
        %1569 = vmatprep.subr.mxu0 0.0
        %1570 = vmatpush2.msra.mxu0 0.0
        %1571 = vmatprep.subr.mxu0 0.0
        %1572 = vmatpush2.msra.mxu0 0.0
        %1573 = vmatprep.subr.mxu0 0.0
        %1574 = vmatpush2.msra.mxu0 0.0
        %1575 = vmatprep.subr.mxu0 0.0
        %1576 = vmatpush2.msra.mxu0 0.0
        %1577 = vmatprep.subr.mxu0 0.0
        %1578 = vmatpush2.msra.mxu0 0.0
        %1579 = vmatprep.mubr.f32.mxu0 0.0
        %1580 = vmatmul.mubr.f32.gmra.mxu0 %v1510
        %v1581 = vpop.f32.mrf.mxu0
        %v1582 = vadd.f32 0.0, %v1581
        %v1583 = vpop.f32.mrf.mxu0
        %1584 = vdwg.mxu0
        %v1585 = vtanh.pop %v1582
        %s1586 = scalar_lea.vmem %s347, 112
        %v1587 = vld [vmem:[%s1586] sm:$0xff]
        %v1588 = vld [vmem:[%s1586 + $0x8] sm:$0xff]
        %v1589 = vlaneseq
        %v1590 = vshrl.u32 %v1589, 7
        %v1591 = vsub.s32 6, %v1590
        %v1592 = vrot.slane %v377, %v1591
        %v1594 = vsel %vm484, %v1585, 0
        %1596 = vmatprep.subr.mxu0 0.0
        %1597 = vmatpush1.msra.mxu0 0.0
        %1598 = vmatprep.subr.mxu0 0.0
        %1599 = vmatpush1.msra.mxu0 0.0
        %1600 = vmatprep.subr.mxu0 0.0
        %1601 = vmatpush1.msra.mxu0 0.0
        %1602 = vmatprep.subr.mxu0 0.0
        %1603 = vmatpush1.msra.mxu0 0.0
        %1604 = vmatprep.subr.mxu0 0.0
        %1605 = vmatpush1.msra.mxu0 0.0
        %1606 = vmatprep.subr.mxu0 0.0
        %1607 = vmatpush1.msra.mxu0 0.0
        %1608 = vmatprep.subr.mxu0 0.0
        %1609 = vmatpush1.msra.mxu0 0.0
        %1610 = vmatprep.subr.mxu0 0.0
        %1611 = vmatpush1.msra.mxu0 0.0
        %1612 = vmatprep.subr.mxu0 0.0
        %1613 = vmatpush1.msra.mxu0 0.0
        %1614 = vmatprep.subr.mxu0 0.0
        %1615 = vmatpush1.msra.mxu0 0.0
        %1616 = vmatprep.subr.mxu0 0.0
        %1617 = vmatpush1.msra.mxu0 0.0
        %1618 = vmatprep.subr.mxu0 0.0
        %1619 = vmatpush1.msra.mxu0 0.0
        %1620 = vmatprep.subr.mxu0 0.0
        %1621 = vmatpush1.msra.mxu0 0.0
        %1622 = vmatprep.subr.mxu0 0.0
        %1623 = vmatpush1.msra.mxu0 0.0
        %1624 = vmatprep.subr.mxu0 0.0
        %1625 = vmatpush1.msra.mxu0 %v1588
        %1626 = vmatprep.subr.mxu0 0.0
        %1627 = vmatpush1.msra.mxu0 %v1587
        %1628 = vmatprep.subr.mxu0 0.0
        %1629 = vmatpush2.msra.mxu0 0.0
        %1630 = vmatprep.subr.mxu0 0.0
        %1631 = vmatpush2.msra.mxu0 0.0
        %1632 = vmatprep.subr.mxu0 0.0
        %1633 = vmatpush2.msra.mxu0 0.0
        %1634 = vmatprep.subr.mxu0 0.0
        %1635 = vmatpush2.msra.mxu0 0.0
        %1636 = vmatprep.subr.mxu0 0.0
        %1637 = vmatpush2.msra.mxu0 0.0
        %1638 = vmatprep.subr.mxu0 0.0
        %1639 = vmatpush2.msra.mxu0 0.0
        %1640 = vmatprep.subr.mxu0 0.0
        %1641 = vmatpush2.msra.mxu0 0.0
        %1642 = vmatprep.subr.mxu0 0.0
        %1643 = vmatpush2.msra.mxu0 0.0
        %1644 = vmatprep.subr.mxu0 0.0
        %1645 = vmatpush2.msra.mxu0 0.0
        %1646 = vmatprep.subr.mxu0 0.0
        %1647 = vmatpush2.msra.mxu0 0.0
        %1648 = vmatprep.subr.mxu0 0.0
        %1649 = vmatpush2.msra.mxu0 0.0
        %1650 = vmatprep.subr.mxu0 0.0
        %1651 = vmatpush2.msra.mxu0 0.0
        %1652 = vmatprep.subr.mxu0 0.0
        %1653 = vmatpush2.msra.mxu0 0.0
        %1654 = vmatprep.subr.mxu0 0.0
        %1655 = vmatpush2.msra.mxu0 0.0
        %1656 = vmatprep.subr.mxu0 0.0
        %1657 = vmatpush2.msra.mxu0 0.0
        %1658 = vmatprep.subr.mxu0 0.0
        %1659 = vmatpush2.msra.mxu0 0.0
        %1660 = vmatprep.mubr.f32.mxu0 0.0
        %1661 = vmatmul.mubr.f32.gmra.mxu0 %v1594
        %v1662 = vpop.f32.mrf.mxu0
        %v1663 = vadd.f32 %v1592, %v1662
        %v1664 = vpop.f32.mrf.mxu0
        %1665 = vdwg.mxu0
        %v1666 = vmax.f32 %v1663, 0.0
        %s1667 = scalar_lea.vmem %s347, 128
        %v1668 = vld [vmem:[%s1667] sm:$0xff]
        %v1669 = vld [vmem:[%s1667 + $0x8] sm:$0xff]
        %v1670 = vlaneseq
        %v1671 = vshrl.u32 %v1670, 7
        %v1672 = vsub.s32 7, %v1671
        %v1673 = vrot.slane %v377, %v1672
        %v1675 = vsel %vm484, %v1666, 0
        %1677 = vmatprep.subr.mxu0 0.0
        %1678 = vmatpush1.msra.mxu0 0.0
        %1679 = vmatprep.subr.mxu0 0.0
        %1680 = vmatpush1.msra.mxu0 0.0
        %1681 = vmatprep.subr.mxu0 0.0
        %1682 = vmatpush1.msra.mxu0 0.0
        %1683 = vmatprep.subr.mxu0 0.0
        %1684 = vmatpush1.msra.mxu0 0.0
        %1685 = vmatprep.subr.mxu0 0.0
        %1686 = vmatpush1.msra.mxu0 0.0
        %1687 = vmatprep.subr.mxu0 0.0
        %1688 = vmatpush1.msra.mxu0 0.0
        %1689 = vmatprep.subr.mxu0 0.0
        %1690 = vmatpush1.msra.mxu0 0.0
        %1691 = vmatprep.subr.mxu0 0.0
        %1692 = vmatpush1.msra.mxu0 0.0
        %1693 = vmatprep.subr.mxu0 0.0
        %1694 = vmatpush1.msra.mxu0 0.0
        %1695 = vmatprep.subr.mxu0 0.0
        %1696 = vmatpush1.msra.mxu0 0.0
        %1697 = vmatprep.subr.mxu0 0.0
        %1698 = vmatpush1.msra.mxu0 0.0
        %1699 = vmatprep.subr.mxu0 0.0
        %1700 = vmatpush1.msra.mxu0 0.0
        %1701 = vmatprep.subr.mxu0 0.0
        %1702 = vmatpush1.msra.mxu0 0.0
        %1703 = vmatprep.subr.mxu0 0.0
        %1704 = vmatpush1.msra.mxu0 0.0
        %1705 = vmatprep.subr.mxu0 0.0
        %1706 = vmatpush1.msra.mxu0 %v1669
        %1707 = vmatprep.subr.mxu0 0.0
        %1708 = vmatpush1.msra.mxu0 %v1668
        %1709 = vmatprep.subr.mxu0 0.0
        %1710 = vmatpush2.msra.mxu0 0.0
        %1711 = vmatprep.subr.mxu0 0.0
        %1712 = vmatpush2.msra.mxu0 0.0
        %1713 = vmatprep.subr.mxu0 0.0
        %1714 = vmatpush2.msra.mxu0 0.0
        %1715 = vmatprep.subr.mxu0 0.0
        %1716 = vmatpush2.msra.mxu0 0.0
        %1717 = vmatprep.subr.mxu0 0.0
        %1718 = vmatpush2.msra.mxu0 0.0
        %1719 = vmatprep.subr.mxu0 0.0
        %1720 = vmatpush2.msra.mxu0 0.0
        %1721 = vmatprep.subr.mxu0 0.0
        %1722 = vmatpush2.msra.mxu0 0.0
        %1723 = vmatprep.subr.mxu0 0.0
        %1724 = vmatpush2.msra.mxu0 0.0
        %1725 = vmatprep.subr.mxu0 0.0
        %1726 = vmatpush2.msra.mxu0 0.0
        %1727 = vmatprep.subr.mxu0 0.0
        %1728 = vmatpush2.msra.mxu0 0.0
        %1729 = vmatprep.subr.mxu0 0.0
        %1730 = vmatpush2.msra.mxu0 0.0
        %1731 = vmatprep.subr.mxu0 0.0
        %1732 = vmatpush2.msra.mxu0 0.0
        %1733 = vmatprep.subr.mxu0 0.0
        %1734 = vmatpush2.msra.mxu0 0.0
        %1735 = vmatprep.subr.mxu0 0.0
        %1736 = vmatpush2.msra.mxu0 0.0
        %1737 = vmatprep.subr.mxu0 0.0
        %1738 = vmatpush2.msra.mxu0 0.0
        %1739 = vmatprep.subr.mxu0 0.0
        %1740 = vmatpush2.msra.mxu0 0.0
        %1741 = vmatprep.mubr.f32.mxu0 0.0
        %1742 = vmatmul.mubr.f32.gmra.mxu0 %v1675
        %v1743 = vpop.f32.mrf.mxu0
        %v1744 = vadd.f32 %v1673, %v1743
        %v1745 = vpop.f32.mrf.mxu0
        %1746 = vdwg.mxu0
        %v1747 = vlaneseq
        %v1748 = vand.u32 %v1747, 127
        %vm1749 = vcmp.eq.s32.totalorder %v1748, 0
        %v1750 = vxor.u32 %v1744, 2147483648
        %v1751 = vmul.f32 %v1750, 1.442695
        %v1752 = vpow.pop %v1751
        %v1753 = vadd.f32 %v1752, 1.0
        %v1754 = vrcp.pop %v1753
        %v1755 = vmul.f32 1.0, %v1754
        %v1756 = vsel %vm1749, %v1755, %v1744
        %vm1757 = vcmask 9216
        %1758 = vst.msk [vmem:[%s330] sm:$0x3] %vm1757, %v1756
        %vm1759 = vcmask 123904
        %1760 = vst.msk [vmem:[%s337] sm:$0x3] %vm1759, %v1585
        %s1761 = sand.u32 %s196, 1
        %s1762 = scalar_lea.sflag [#allocation3], %s1761
        %s1763 = sand.u32 %s196, 1
        %s1764 = smul.addr %s1763, 2
        %s1765 = scalar_lea.vmem [#allocation2], %s1764
        %s1766 = sand.u32 %s222, 1
        %s1767 = scalar_lea.sflag [#allocation5], %s1766
        %s1768 = sand.u32 %s222, 1
        %s1769 = smul.addr %s1768, 2
        %s1770 = scalar_lea.vmem [#allocation4], %s1769
        // Predicated region
        $region49: #{_ensemble_forward_fused.1} parent=47 // pred_check
          %p1771 = pneg %p206
        $region50: #{_ensemble_forward_fused.1} parent=47 // pred_check_branch
          %1773 = sbr.rel (%p1771) target = $region52
        $region51: #{_ensemble_forward_fused.1} parent=47 // pred_region
          %s1775 = ssub.s32 32, 32
          %1776 = vsyncadd %s1762, %s1775
          %s1777 = smul.addr %s26, 32
          %s1778 = scalar_lea.hbm %s7, %s1777
          %s1780 = sshll.u32 %s1765, 4
          %s1781 = int_to_ptr.vmem [resolvable:$true] %s1780
          %1783 = dma.vmem_to_hbm [thread:$0]  %s1781, 32, %s1778, %s1762
        $region52: #{_ensemble_forward_fused.1} parent=47 // pred_fallthru
          _
        // Predicated region
        $region53: #{_ensemble_forward_fused.1} parent=47 // pred_check
          %p1784 = pneg %p232
        $region54: #{_ensemble_forward_fused.1} parent=47 // pred_check_branch
          %1786 = sbr.rel (%p1784) target = $region56
        $region55: #{_ensemble_forward_fused.1} parent=47 // pred_region
          %s1788 = ssub.s32 32, 32
          %1789 = vsyncadd %s1767, %s1788
          %s1790 = smul.addr %s26, 32
          %s1791 = scalar_lea.hbm %s8, %s1790
          %s1793 = sshll.u32 %s1770, 4
          %s1794 = int_to_ptr.vmem [resolvable:$true] %s1793
          %1796 = dma.vmem_to_hbm [thread:$0]  %s1794, 32, %s1791, %s1767
        $region56: #{_ensemble_forward_fused.1} parent=47 // pred_fallthru
          _
      $region48: #{_ensemble_forward_fused.1} parent=5 // pred_fallthru
        _
      %p1797 = scmp.le.s32.totalorder 2, %s21
      // Predicated region
      $region57: #{_ensemble_forward_fused.1} parent=5 // pred_check
        %p1798 = pneg %p1797
      $region58: #{_ensemble_forward_fused.1} parent=5 // pred_check_branch
        %1800 = sbr.rel (%p1798) target = $region60
      $region59: #{_ensemble_forward_fused.1} parent=5 // pred_region
        %s1801 = ssub.s32 %s21, 2
        // Predicated region
        $region61: #{_ensemble_forward_fused.1} parent=59 // pred_check
          %p1802 = pneg %p212
        $region62: #{_ensemble_forward_fused.1} parent=59 // pred_check_branch
          %1804 = sbr.rel (%p1802) target = $region64
        $region63: #{_ensemble_forward_fused.1} parent=59 // pred_region
          %s1805 = sand.u32 %s197, 1
          %s1806 = scalar_lea.sflag [#allocation3], %s1805
          %s1807 = sand.u32 %s197, 1
          %s1808 = smul.addr %s1807, 2
          %s1809 = scalar_lea.vmem [#allocation2], %s1808
          %1810 = dma.done %s1806, 32
        $region64: #{_ensemble_forward_fused.1} parent=59 // pred_fallthru
          _
        // Predicated region
        $region65: #{_ensemble_forward_fused.1} parent=59 // pred_check
          %p1811 = pneg %p238
        $region66: #{_ensemble_forward_fused.1} parent=59 // pred_check_branch
          %1813 = sbr.rel (%p1811) target = $region68
        $region67: #{_ensemble_forward_fused.1} parent=59 // pred_region
          %s1814 = sand.u32 %s223, 1
          %s1815 = scalar_lea.sflag [#allocation5], %s1814
          %s1816 = sand.u32 %s223, 1
          %s1817 = smul.addr %s1816, 2
          %s1818 = scalar_lea.vmem [#allocation4], %s1817
          %1819 = dma.done %s1815, 32
        $region68: #{_ensemble_forward_fused.1} parent=59 // pred_fallthru
          _
      $region60: #{_ensemble_forward_fused.1} parent=5 // pred_fallthru
        _
    $region6: #{_ensemble_forward_fused.1} parent=1 // loop_footer
      %s25 = sadd.s32 1, %s21
    $region7: #{_ensemble_forward_fused.1} parent=1 // loop_footer_branch
      %20 = sbr.rel target = $region3
    $region8: #{_ensemble_forward_fused.1} parent=1 // loop_exit
      _
    %1820 = vsyncpa [#allocation3], 1
    %s1821 = scalar_lea.sflag [#allocation3], 1
    %1822 = vsyncpa %s1821, 1
    %1823 = vsyncpa [#allocation5], 1
    %s1824 = scalar_lea.sflag [#allocation5], 1
    %1825 = vsyncpa %s1824, 1

</llo_original>
